<compile_context>
chip_gen: v7x
topology: tpu7x:2x2x1
jax: 0.10.0
libtpu: 0.0.40
codegen_flags: <defaults>
</compile_context>

<pallas_src>
import functools
import math

import jax
import jax.numpy as jnp
from jax.experimental import pallas as pl
from jax.experimental.pallas import tpu as pltpu


def _round_up(n, m):
    return ((n + m - 1) // m) * m


@functools.lru_cache(maxsize=1)
def _vmem_cap_bytes():
    """Physical VMEM per core; safe 64 MiB (v7x) fallback if the query fails."""
    try:
        info = pltpu.get_tpu_info()
        cap = int(getattr(info, "vmem_capacity_bytes", 0) or 0)
        if cap > 0:
            return cap
    except Exception:
        pass
    return 64 * 1024 * 1024


def _silu_f32(h):
    # Exact SiLU via tanh: sigmoid(h) = 0.5*(1+tanh(h/2)).  Single EUP op per
    # element (vs exp + reciprocal) and numerically equivalent to jax.nn.silu.
    return h * (0.5 * (1.0 + jnp.tanh(0.5 * h)))


def _activate(h, act):
    if act == "relu":
        return jnp.maximum(h, 0.0)
    if act == "gelu":
        return jax.nn.gelu(h)
    return _silu_f32(h)


# ----------------------------- kernels -------------------------------------- #

def _mlp_resident_kernel(x_ref, w1_ref, b1_ref, w2_ref, b2_ref, o_ref, *, act):
    # grid = (row tiles,); W1/W2/b1/b2 block indices are constant -> weights are
    # read from HBM once and stay resident in VMEM across all row tiles.
    x = x_ref[...].astype(w1_ref.dtype)                       # bf16 cast in-kernel
    h = jnp.dot(x, w1_ref[...], preferred_element_type=jnp.float32)
    h = _activate(h + b1_ref[...], act)
    y = jnp.dot(h.astype(w2_ref.dtype), w2_ref[...],
                preferred_element_type=jnp.float32) + b2_ref[...]
    o_ref[...] = y.astype(o_ref.dtype)


def _mlp_ktiled_kernel_f32out(x_ref, w1_ref, b1_ref, w2_ref, b2_ref, o_ref, *, act):
    # grid = (row tiles [parallel], hidden tiles [arbitrary]); the f32 output block
    # index is (i, 0) so it is resident across k -> accumulate straight into it.
    k = pl.program_id(1)

    @pl.when(k == 0)
    def _init():
        o_ref[...] = jnp.broadcast_to(b2_ref[...], o_ref.shape)

    x = x_ref[...].astype(w1_ref.dtype)
    h = jnp.dot(x, w1_ref[...], preferred_element_type=jnp.float32)
    h = _activate(h + b1_ref[...], act)
    o_ref[...] += jnp.dot(h.astype(w2_ref.dtype), w2_ref[...],
                          preferred_element_type=jnp.float32)


def _mlp_ktiled_kernel_acc(x_ref, w1_ref, b1_ref, w2_ref, b2_ref, o_ref, acc_ref,
                           *, act):
    # Same as above, but with an f32 VMEM accumulator for non-f32 outputs.
    k = pl.program_id(1)

    @pl.when(k == 0)
    def _init():
        acc_ref[...] = jnp.broadcast_to(b2_ref[...], acc_ref.shape)

    x = x_ref[...].astype(w1_ref.dtype)
    h = jnp.dot(x, w1_ref[...], preferred_element_type=jnp.float32)
    h = _activate(h + b1_ref[...], act)
    acc_ref[...] += jnp.dot(h.astype(w2_ref.dtype), w2_ref[...],
                            preferred_element_type=jnp.float32)

    @pl.when(k == pl.num_programs(1) - 1)
    def _store():
        o_ref[...] = acc_ref[...].astype(o_ref.dtype)


# --------------------------- configuration ---------------------------------- #

def _choose_config(M, d_model, Dp, x_bytes, out_bytes, w_bytes):
    vmem_cap = _vmem_cap_bytes()
    # ~52 MiB on v7x (64 MiB physical), ~105 MiB on v5e/v6e (128 MiB physical).
    vmem_limit = min(int(0.82 * vmem_cap), 110 * 2 ** 20)
    budget = int(0.85 * vmem_limit)          # headroom for Mosaic internal scratch

    def row_tile(per_row_bytes, fixed_bytes):
        tm_max = (budget - fixed_bytes) // per_row_bytes
        if tm_max < 8:
            return 0
        tm = min(1024, tm_max, _round_up((M + 1) // 2, 8))   # >=2 row tiles (v7x)
        if tm >= 256:
            tm = (tm // 256) * 256           # match the 256-tall MXU
        else:
            tm = max(8, (tm // 8) * 8)
        return tm

    # --- weights-resident path: whole W1/W2 in VMEM, no reduction axis --------
    resident_fixed = 2 * (2 * d_model * Dp * w_bytes) + 2 * (Dp + d_model) * 4
    resident_per_row = (2 * d_model * x_bytes      # x tiles (double buffered)
                        + 2 * d_model * out_bytes  # out tiles
                        + d_model * w_bytes        # bf16 cast of x tile
                        + Dp * (4 + w_bytes))      # f32 h + bf16 cast of h
    tm_res = row_tile(resident_per_row, resident_fixed)
    if tm_res >= min(128, _round_up(M, 8)):
        return {"mode": "resident", "tm": tm_res, "tn": Dp, "vmem_limit": vmem_limit}

    # --- k-tiled path: stream (d_model, tn)/(tn, d_model) weight blocks -------
    for tn in (512, 256, 128):
        if Dp % tn:
            continue
        fixed = 2 * (2 * d_model * tn * w_bytes) + 2 * (tn + d_model) * 4
        per_row = (2 * d_model * x_bytes
                   + 2 * d_model * out_bytes
                   + d_model * 4                   # acc scratch (worst case)
                   + d_model * w_bytes             # bf16 cast of x tile
                   + tn * (4 + w_bytes))           # f32 h + bf16 cast of h
        tm = row_tile(per_row, fixed)
        if tm >= 128 or tn == 128:
            return {"mode": "ktiled", "tm": max(tm, 8), "tn": tn,
                    "vmem_limit": vmem_limit}
    return {"mode": "ktiled", "tm": 8, "tn": 128, "vmem_limit": vmem_limit}


# ------------------------------ wrapper -------------------------------------- #

def init_mlp_params(key, d_model, d_mem, dtype=jnp.float32):
    """Deterministic init mirroring torch nn.Linear: U(-1/sqrt(fan_in), 1/sqrt(fan_in))."""
    k1, k2, k3, k4 = jax.random.split(key, 4)
    bound1 = 1.0 / math.sqrt(d_model)
    bound2 = 1.0 / math.sqrt(d_mem)
    w1 = jax.random.uniform(k1, (d_model, d_mem), dtype, -bound1, bound1)
    b1 = jax.random.uniform(k2, (d_mem,), dtype, -bound1, bound1)
    w2 = jax.random.uniform(k3, (d_mem, d_model), dtype, -bound2, bound2)
    b2 = jax.random.uniform(k4, (d_model,), dtype, -bound2, bound2)
    return w1, b1, w2, b2


def prepare_mlp_params(w1, b1, w2, b2, compute_dtype=jnp.bfloat16):
    """One-time weight cast + hidden-dim lane padding (keep OUT of the hot path).

    Padded b1 = 0 and padded W2 rows = 0, so the padding contributes nothing.
    """
    d_model, d_mem = w1.shape
    Dp = _round_up(d_mem, 128)
    w1c = jnp.asarray(w1, compute_dtype)
    w2c = jnp.asarray(w2, compute_dtype)
    b1f = jnp.asarray(b1, jnp.float32)
    if Dp != d_mem:
        w1c = jnp.pad(w1c, ((0, 0), (0, Dp - d_mem)))
        w2c = jnp.pad(w2c, ((0, Dp - d_mem), (0, 0)))
        b1f = jnp.pad(b1f, ((0, Dp - d_mem),))
    b2f = jnp.asarray(b2, jnp.float32)
    return w1c, b1f.reshape(1, Dp), w2c, b2f.reshape(1, d_model)


@functools.partial(jax.jit, static_argnames=("act",))
def mlp_pallas(x, w1c, b1_2d, w2c, b2_2d, *, act="silu"):
    """Fused lin2(act(lin1(x))).  x: (..., d_model); weights from prepare_mlp_params."""
    *lead, d_model = x.shape
    Dp = w1c.shape[1]
    out_dtype = x.dtype
    M = 1
    for s in lead:
        M *= s
    x2d = x.reshape(M, d_model)

    cfg = _choose_config(
        M, d_model, Dp,
        x_bytes=x2d.dtype.itemsize,
        out_bytes=jnp.dtype(out_dtype).itemsize,
        w_bytes=w1c.dtype.itemsize,
    )
    tm, tn, vmem_limit = cfg["tm"], cfg["tn"], cfg["vmem_limit"]

    Mp = _round_up(M, tm)
    if Mp != M:
        x2d = jnp.pad(x2d, ((0, Mp - M), (0, 0)))   # padded rows sliced off below

    if cfg["mode"] == "resident":
        out = pl.pallas_call(
            functools.partial(_mlp_resident_kernel, act=act),
            out_shape=jax.ShapeDtypeStruct((Mp, d_model), out_dtype),
            grid_spec=pltpu.PrefetchScalarGridSpec(
                num_scalar_prefetch=0,
                grid=(Mp // tm,),
                in_specs=[
                    pl.BlockSpec((tm, d_model), lambda i: (i, 0)),    # x row tile
                    pl.BlockSpec((d_model, Dp), lambda i: (0, 0)),    # W1 (resident)
                    pl.BlockSpec((1, Dp), lambda i: (0, 0)),          # b1
                    pl.BlockSpec((Dp, d_model), lambda i: (0, 0)),    # W2 (resident)
                    pl.BlockSpec((1, d_model), lambda i: (0, 0)),     # b2
                ],
                out_specs=pl.BlockSpec((tm, d_model), lambda i: (i, 0)),
            ),
            compiler_params=pltpu.CompilerParams(
                dimension_semantics=("parallel",),
                vmem_limit_bytes=vmem_limit,
            ),
        )(x2d, w1c, b1_2d, w2c, b2_2d)
    else:
        if jnp.dtype(out_dtype) == jnp.float32:
            kernel = functools.partial(_mlp_ktiled_kernel_f32out, act=act)
            scratch = []
        else:
            kernel = functools.partial(_mlp_ktiled_kernel_acc, act=act)
            scratch = [pltpu.VMEM((tm, d_model), jnp.float32)]
        out = pl.pallas_call(
            kernel,
            out_shape=jax.ShapeDtypeStruct((Mp, d_model), out_dtype),
            grid_spec=pltpu.PrefetchScalarGridSpec(
                num_scalar_prefetch=0,
                grid=(Mp // tm, Dp // tn),
                in_specs=[
                    pl.BlockSpec((tm, d_model), lambda i, k: (i, 0)),  # x row tile
                    pl.BlockSpec((d_model, tn), lambda i, k: (0, k)),  # W1 hidden blk
                    pl.BlockSpec((1, tn), lambda i, k: (0, k)),        # b1 hidden blk
                    pl.BlockSpec((tn, d_model), lambda i, k: (k, 0)),  # W2 hidden blk
                    pl.BlockSpec((1, d_model), lambda i, k: (0, 0)),   # b2
                ],
                out_specs=pl.BlockSpec((tm, d_model), lambda i, k: (i, 0)),
                scratch_shapes=scratch,
            ),
            compiler_params=pltpu.CompilerParams(
                dimension_semantics=("parallel", "arbitrary"),
                vmem_limit_bytes=vmem_limit,
            ),
        )(x2d, w1c, b1_2d, w2c, b2_2d)

    if Mp != M:
        out = out[:M]
    return out.reshape(*lead, d_model)


if __name__ == "__main__":
    key = jax.random.PRNGKey(0)
    kx, kp = jax.random.split(key)

    # Small demo shapes consistent with MLP defaults (d_mem = 4 * d_model).
    B, S, d_model = 2, 128, 128
    d_mem = 4 * d_model  # 512

    x = jax.random.normal(kx, (B, S, d_model), jnp.float32)
    w1, b1, w2, b2 = init_mlp_params(kp, d_model, d_mem)

    # One-time weight prep (bf16 cast + lane padding) outside the hot path.
    w1c, b1_2d, w2c, b2_2d = prepare_mlp_params(w1, b1, w2, b2)

    out = mlp_pallas(x, w1c, b1_2d, w2c, b2_2d)
    out = jax.block_until_ready(out)

    # Reference with matching mixed precision: bf16 matmul inputs, f32 accumulation,
    # exact SiLU.
    xb = x.reshape(-1, d_model).astype(jnp.bfloat16)
    h_ref = jnp.dot(xb, w1.astype(jnp.bfloat16),
                    preferred_element_type=jnp.float32) + b1
    h_ref = h_ref * jax.nn.sigmoid(h_ref)
    y_ref = (jnp.dot(h_ref.astype(jnp.bfloat16), w2.astype(jnp.bfloat16),
                     preferred_element_type=jnp.float32) + b2).reshape(B, S, d_model)

    assert out.shape == (B, S, d_model)
    assert jnp.allclose(out, y_ref, atol=2e-2, rtol=2e-2), "mismatch vs reference"

    print("KERNEL_OK")
</pallas_src>

<mosaic_0001>
module attributes {stable_mosaic.version = 11 : i64} {
  func.func @_mlp_resident_kernel(%arg0: i32, %arg1: memref<128x128xf32, #tpu.memory_space<vmem>>, %arg2: memref<128x512xbf16, #tpu.memory_space<vmem>>, %arg3: memref<1x512xf32, #tpu.memory_space<vmem>>, %arg4: memref<512x128xbf16, #tpu.memory_space<vmem>>, %arg5: memref<1x128xf32, #tpu.memory_space<vmem>>, %arg6: memref<128x128xf32, #tpu.memory_space<vmem>>) attributes {dimension_semantics = [#tpu.dimension_semantics<parallel>], iteration_bounds = array<i64: 2>, scalar_prefetch = 0 : i64, scratch_operands = 0 : i64, tpu.core_type = #tpu.core_type<tc>, window_params = [{transform_indices = @transform_0, window_bounds = array<i64: 128, 128>}, {pipeline_mode = #tpu.pipeline_mode<synchronous>, transform_indices = @transform_1, window_bounds = array<i64: 128, 512>}, {pipeline_mode = #tpu.pipeline_mode<synchronous>, transform_indices = @transform_2, window_bounds = array<i64: 1, 512>}, {pipeline_mode = #tpu.pipeline_mode<synchronous>, transform_indices = @transform_3, window_bounds = array<i64: 512, 128>}, {pipeline_mode = #tpu.pipeline_mode<synchronous>, transform_indices = @transform_4, window_bounds = array<i64: 1, 128>}, {transform_indices = @transform_5, window_bounds = array<i64: 128, 128>}]} {
    %c0 = arith.constant 0 : index
    %c0_0 = arith.constant 0 : index
    %0 = vector.load %arg1[%c0, %c0_0] : memref<128x128xf32, #tpu.memory_space<vmem>>, vector<128x128xf32>
    %1 = arith.truncf %0 : vector<128x128xf32> to vector<128x128xbf16>
    %c0_1 = arith.constant 0 : index
    %c0_2 = arith.constant 0 : index
    %2 = vector.load %arg2[%c0_1, %c0_2] : memref<128x512xbf16, #tpu.memory_space<vmem>>, vector<128x512xbf16>
    %cst = arith.constant dense<0.000000e+00> : vector<128x512xf32>
    %3 = tpu.matmul %1, %2, %cst {dimension_numbers = #tpu.dot_dimension_numbers<[1], [0], [0], [1], [0, 0, 1, 1], [], []>} : vector<128x128xbf16>, vector<128x512xbf16>, vector<128x512xf32> -> vector<128x512xf32>
    %c0_3 = arith.constant 0 : index
    %c0_4 = arith.constant 0 : index
    %4 = vector.load %arg3[%c0_3, %c0_4] : memref<1x512xf32, #tpu.memory_space<vmem>>, vector<1x512xf32>
    %5 = vector.broadcast %4 : vector<1x512xf32> to vector<128x512xf32>
    %6 = arith.addf %3, %5 : vector<128x512xf32>
    %cst_5 = arith.constant 5.000000e-01 : f32
    %7 = vector.broadcast %cst_5 : f32 to vector<128x512xf32>
    %8 = arith.mulf %7, %6 : vector<128x512xf32>
    %9 = math.tanh %8 : vector<128x512xf32>
    %cst_6 = arith.constant 1.000000e+00 : f32
    %10 = vector.broadcast %cst_6 : f32 to vector<128x512xf32>
    %11 = arith.addf %10, %9 : vector<128x512xf32>
    %cst_7 = arith.constant 5.000000e-01 : f32
    %12 = vector.broadcast %cst_7 : f32 to vector<128x512xf32>
    %13 = arith.mulf %12, %11 : vector<128x512xf32>
    %14 = arith.mulf %6, %13 : vector<128x512xf32>
    %15 = arith.truncf %14 : vector<128x512xf32> to vector<128x512xbf16>
    %c0_8 = arith.constant 0 : index
    %c0_9 = arith.constant 0 : index
    %16 = vector.load %arg4[%c0_8, %c0_9] : memref<512x128xbf16, #tpu.memory_space<vmem>>, vector<512x128xbf16>
    %cst_10 = arith.constant dense<0.000000e+00> : vector<128x128xf32>
    %17 = tpu.matmul %15, %16, %cst_10 {dimension_numbers = #tpu.dot_dimension_numbers<[1], [0], [0], [1], [0, 0, 1, 1], [], []>} : vector<128x512xbf16>, vector<512x128xbf16>, vector<128x128xf32> -> vector<128x128xf32>
    %c0_11 = arith.constant 0 : index
    %c0_12 = arith.constant 0 : index
    %18 = vector.load %arg5[%c0_11, %c0_12] : memref<1x128xf32, #tpu.memory_space<vmem>>, vector<1x128xf32>
    %19 = vector.broadcast %18 : vector<1x128xf32> to vector<128x128xf32>
    %20 = arith.addf %17, %19 : vector<128x128xf32>
    %c0_13 = arith.constant 0 : index
    %c0_14 = arith.constant 0 : index
    %21 = vector.load %arg6[%c0_13, %c0_14] : memref<128x128xf32, #tpu.memory_space<vmem>>, vector<128x128xf32>
    tpu.vector_store %arg6[%c0_13, %c0_14], %20 {strides = array<i32>} : memref<128x128xf32, #tpu.memory_space<vmem>>, vector<128x128xf32>,
    return
  }
  func.func @transform_0(%arg0: i32) -> (i32, i32) {
    %c0_i32 = arith.constant 0 : i32
    %c0_i32_0 = arith.constant 0 : i32
    return %arg0, %c0_i32 : i32, i32
  }
  func.func @transform_1(%arg0: i32) -> (i32, i32) {
    %c0_i32 = arith.constant 0 : i32
    %c0_i32_0 = arith.constant 0 : i32
    %c0_i32_1 = arith.constant 0 : i32
    return %c0_i32, %c0_i32_0 : i32, i32
  }
  func.func @transform_2(%arg0: i32) -> (i32, i32) {
    %c0_i32 = arith.constant 0 : i32
    %c0_i32_0 = arith.constant 0 : i32
    %c0_i32_1 = arith.constant 0 : i32
    return %c0_i32, %c0_i32_0 : i32, i32
  }
  func.func @transform_3(%arg0: i32) -> (i32, i32) {
    %c0_i32 = arith.constant 0 : i32
    %c0_i32_0 = arith.constant 0 : i32
    %c0_i32_1 = arith.constant 0 : i32
    return %c0_i32, %c0_i32_0 : i32, i32
  }
  func.func @transform_4(%arg0: i32) -> (i32, i32) {
    %c0_i32 = arith.constant 0 : i32
    %c0_i32_0 = arith.constant 0 : i32
    %c0_i32_1 = arith.constant 0 : i32
    return %c0_i32, %c0_i32_0 : i32, i32
  }
  func.func @transform_5(%arg0: i32) -> (i32, i32) {
    %c0_i32 = arith.constant 0 : i32
    %c0_i32_0 = arith.constant 0 : i32
    return %arg0, %c0_i32 : i32, i32
  }
}

</mosaic_0001>

<llo_original>
// kernel: mlp_pallas.1
$region0: #{mlp_pallas.1}
  #allocation0 [shape = 'u32[]', space=smem, size = 0x4, offset = 0x4, fixed_abs, tag = 'smem constant byte address 0x4 - core index']
  #allocation1 [shape = 'u32[144,128]{1,0:T(1,128)}', space=vmem, size = 0x12000, scoped, tag = 'internal scratch']
  %s0 = inlined_call_operand.hbm [shape: f32[256,128], index: 0, kind: input, shape index: {}]
  %s1 = inlined_call_operand.hbm [shape: bf16[128,512], index: 1, kind: input, shape index: {}]
  %s2 = inlined_call_operand.vmem [shape: f32[1,512], index: 2, kind: input, shape index: {}]
  %s3 = inlined_call_operand.hbm [shape: bf16[512,128], index: 3, kind: input, shape index: {}]
  %s4 = inlined_call_operand.vmem [shape: f32[1,128], index: 4, kind: input, shape index: {}]
  %s5 = inlined_call_operand.hbm [shape: f32[256,128], index: 5, kind: output, shape index: {}]
  %s6 = sld [smem:[#allocation0]]
  $region65: #{mlp_pallas.1} parent=0
    _
  %s8 = ssub.s32 1, %s6
  %s9 = scalar_select 0, %s8, %s6
  $region1: #{mlp_pallas.1} parent=0
    #allocation2 [shape = 'u8[131072]{0}', space=vmem, size = 0x20000, scoped, tag = 'input window, operand 0']
    #allocation3 [shape = 's32[2]{0}', space=sflag, size = 0x8, scoped, tag = 'scoped memory for mlp_pallas.1']
    #allocation4 [shape = 's32[2]{0}', space=sflag, size = 0x8, scoped, tag = 'scoped memory for mlp_pallas.1']
    #allocation5 [shape = 'u8[131072]{0}', space=vmem, size = 0x20000, scoped, tag = 'input window, operand 1, single buffered']
    #allocation6 [shape = 's32[1]{0}', space=sflag, size = 0x4, scoped, tag = 'scoped memory for mlp_pallas.1']
    #allocation7 [shape = 'u8[131072]{0}', space=vmem, size = 0x20000, scoped, tag = 'input window, operand 3, single buffered']
    #allocation8 [shape = 'u8[131072]{0}', space=vmem, size = 0x20000, scoped, tag = 'output window, operand 0']
    %10 = vsyncpa [#allocation3], 0
    %s11 = scalar_lea.sflag [#allocation3], 1
    %12 = vsyncpa %s11, 0
    %13 = vsyncpa [#allocation6], 0
    %14 = vsyncpa [#allocation4], 0
    %s15 = scalar_lea.sflag [#allocation4], 1
    %16 = vsyncpa %s15, 0
    loop: start=0, step=1, limit=4
    $region2: #{mlp_pallas.1} parent=1 // loop_pre_header
      _
    $region3: #{mlp_pallas.1} parent=1 // loop_header
      %s18 = sphi 0, %s22
      %p19 = scmp.ge.s32.totalorder %s18, 4
      %s28 = sphi 0, %s30
      %s31 = sphi 0, %s28
      %s32 = sphi 0, %s31
      %s48 = sphi 0, %s32
      %s52 = sphi 0, %s52
      %s54 = sphi 0, %s52
      %s55 = sphi 0, %s54
      %s69 = sphi 0, %s55
      %s73 = sphi 0, %s73
      %s75 = sphi 0, %s73
      %s76 = sphi 0, %s75
      %s90 = sphi 0, %s76
      %s94 = sphi 0, %s94
      %s96 = sphi 0, %s94
      %s97 = sphi 0, %s96
      %s111 = sphi 0, %s97
      %s115 = sphi 0, %s115
      %s117 = sphi 0, %s115
      %s118 = sphi 0, %s117
      %s132 = sphi 0, %s118
      %s138 = sphi 0, %s140
      %s141 = sphi 0, %s138
      %s142 = sphi 0, %s141
      %s158 = sphi 0, %s142
    $region4: #{mlp_pallas.1} parent=1 // loop_header_branch
      %21 = sbr.rel (%p19) target = $region8
    $region5: #{mlp_pallas.1} parent=1 // loop_body
      %s23 = ssub.s32 %s18, 1
      %s24 = ssub.s32 %s18, 2
      %s25 = sadd.s32 %s18, 1
      %s26 = ssub.s32 %s18, %s25
      %p27 = scmp.eq.s32.totalorder %s26, 0
      %s29 = sadd.s32 %s28, 1
      %s30 = scalar_select %p27, %s28, %s29
      %p33 = pneg %p27
      %p34 = scmp.eq.s32.totalorder %s18, 1
      %p35 = por %p33, %p34
      %p36 = scmp.ne.s32.totalorder %s28, %s31
      %p37 = scmp.eq.s32.totalorder %s18, 0
      %p38 = por %p36, %p37
      %p39 = scmp.ne.s32.totalorder %s28, %s31
      %p40 = scmp.eq.s32.totalorder %s23, 1
      %p41 = por %p39, %p40
      %p42 = scmp.ne.s32.totalorder %s31, %s32
      %p43 = scmp.eq.s32.totalorder %s23, 0
      %p44 = por %p42, %p43
      %p45 = scmp.ne.s32.totalorder %s31, %s32
      %p46 = scmp.eq.s32.totalorder %s24, 1
      %p47 = por %p45, %p46
      %p49 = scmp.ne.s32.totalorder %s32, %s48
      %p50 = scmp.eq.s32.totalorder %s24, 0
      %p51 = por %p49, %p50
      %s53 = sadd.s32 %s52, 1
      %p56 = scmp.eq.s32.totalorder %s18, 1
      %p57 = scmp.ne.s32.totalorder %s52, %s54
      %p58 = scmp.eq.s32.totalorder %s18, 0
      %p59 = por %p57, %p58
      %p60 = scmp.ne.s32.totalorder %s52, %s54
      %p61 = scmp.eq.s32.totalorder %s23, 1
      %p62 = por %p60, %p61
      %p63 = scmp.ne.s32.totalorder %s54, %s55
      %p64 = scmp.eq.s32.totalorder %s23, 0
      %p65 = por %p63, %p64
      %p66 = scmp.ne.s32.totalorder %s54, %s55
      %p67 = scmp.eq.s32.totalorder %s24, 1
      %p68 = por %p66, %p67
      %p70 = scmp.ne.s32.totalorder %s55, %s69
      %p71 = scmp.eq.s32.totalorder %s24, 0
      %p72 = por %p70, %p71
      %s74 = sadd.s32 %s73, 1
      %p77 = scmp.eq.s32.totalorder %s18, 1
      %p78 = scmp.ne.s32.totalorder %s73, %s75
      %p79 = scmp.eq.s32.totalorder %s18, 0
      %p80 = por %p78, %p79
      %p81 = scmp.ne.s32.totalorder %s73, %s75
      %p82 = scmp.eq.s32.totalorder %s23, 1
      %p83 = por %p81, %p82
      %p84 = scmp.ne.s32.totalorder %s75, %s76
      %p85 = scmp.eq.s32.totalorder %s23, 0
      %p86 = por %p84, %p85
      %p87 = scmp.ne.s32.totalorder %s75, %s76
      %p88 = scmp.eq.s32.totalorder %s24, 1
      %p89 = por %p87, %p88
      %p91 = scmp.ne.s32.totalorder %s76, %s90
      %p92 = scmp.eq.s32.totalorder %s24, 0
      %p93 = por %p91, %p92
      %s95 = sadd.s32 %s94, 1
      %p98 = scmp.eq.s32.totalorder %s18, 1
      %p99 = scmp.ne.s32.totalorder %s94, %s96
      %p100 = scmp.eq.s32.totalorder %s18, 0
      %p101 = por %p99, %p100
      %p102 = scmp.ne.s32.totalorder %s94, %s96
      %p103 = scmp.eq.s32.totalorder %s23, 1
      %p104 = por %p102, %p103
      %p105 = scmp.ne.s32.totalorder %s96, %s97
      %p106 = scmp.eq.s32.totalorder %s23, 0
      %p107 = por %p105, %p106
      %p108 = scmp.ne.s32.totalorder %s96, %s97
      %p109 = scmp.eq.s32.totalorder %s24, 1
      %p110 = por %p108, %p109
      %p112 = scmp.ne.s32.totalorder %s97, %s111
      %p113 = scmp.eq.s32.totalorder %s24, 0
      %p114 = por %p112, %p113
      %s116 = sadd.s32 %s115, 1
      %p119 = scmp.eq.s32.totalorder %s18, 1
      %p120 = scmp.ne.s32.totalorder %s115, %s117
      %p121 = scmp.eq.s32.totalorder %s18, 0
      %p122 = por %p120, %p121
      %p123 = scmp.ne.s32.totalorder %s115, %s117
      %p124 = scmp.eq.s32.totalorder %s23, 1
      %p125 = por %p123, %p124
      %p126 = scmp.ne.s32.totalorder %s117, %s118
      %p127 = scmp.eq.s32.totalorder %s23, 0
      %p128 = por %p126, %p127
      %p129 = scmp.ne.s32.totalorder %s117, %s118
      %p130 = scmp.eq.s32.totalorder %s24, 1
      %p131 = por %p129, %p130
      %p133 = scmp.ne.s32.totalorder %s118, %s132
      %p134 = scmp.eq.s32.totalorder %s24, 0
      %p135 = por %p133, %p134
      %s136 = ssub.s32 %s18, %s25
      %p137 = scmp.eq.s32.totalorder %s136, 0
      %s139 = sadd.s32 %s138, 1
      %s140 = scalar_select %p137, %s138, %s139
      %p143 = pneg %p137
      %p144 = scmp.eq.s32.totalorder %s18, 1
      %p145 = por %p143, %p144
      %p146 = scmp.ne.s32.totalorder %s138, %s141
      %p147 = scmp.eq.s32.totalorder %s18, 0
      %p148 = por %p146, %p147
      %p149 = scmp.ne.s32.totalorder %s138, %s141
      %p150 = scmp.eq.s32.totalorder %s23, 1
      %p151 = por %p149, %p150
      %p152 = scmp.ne.s32.totalorder %s141, %s142
      %p153 = scmp.eq.s32.totalorder %s23, 0
      %p154 = por %p152, %p153
      %p155 = scmp.ne.s32.totalorder %s141, %s142
      %p156 = scmp.eq.s32.totalorder %s24, 1
      %p157 = por %p155, %p156
      %p159 = scmp.ne.s32.totalorder %s142, %s158
      %p160 = scmp.eq.s32.totalorder %s24, 0
      %p161 = por %p159, %p160
      %p162 = scmp.le.s32.totalorder 1, %s18
      %p163 = scmp.lt.s32.totalorder %s18, 3
      %p164 = pnand %p162, %p163
      %p165 = pneg %p164
      // Predicated region
      $region9: #{mlp_pallas.1} parent=5 // pred_check
        _
      $region10: #{mlp_pallas.1} parent=5 // pred_check_branch
        %167 = sbr.rel (%p164) target = $region12
      $region11: #{mlp_pallas.1} parent=5 // pred_region
        %s168 = ssub.s32 %s18, 1
        // Predicated region
        $region13: #{mlp_pallas.1} parent=11 // pred_check
          %p169 = pneg %p65
        $region14: #{mlp_pallas.1} parent=11 // pred_check_branch
          %171 = sbr.rel (%p169) target = $region16
        $region15: #{mlp_pallas.1} parent=11 // pred_region
          %s173 = ssub.s32 4096, 4096
          %174 = vsyncadd [#allocation6], %s173
          %s175 = sshll.u32 [#allocation5], 4
          %s176 = int_to_ptr.vmem [resolvable:$true] %s175
          %181 = dma.hbm_to_vmem [thread:$0]  %s1, 4096, %s176, [#allocation6], 256, 256, 16
        $region16: #{mlp_pallas.1} parent=11 // pred_fallthru
          _
        // Predicated region
        $region17: #{mlp_pallas.1} parent=11 // pred_check
          %p182 = pneg %p86
        $region18: #{mlp_pallas.1} parent=11 // pred_check_branch
          %184 = sbr.rel (%p182) target = $region20
        $region19: #{mlp_pallas.1} parent=11 // pred_region
          _
        $region20: #{mlp_pallas.1} parent=11 // pred_fallthru
          _
        // Predicated region
        $region21: #{mlp_pallas.1} parent=11 // pred_check
          %p185 = pneg %p107
        $region22: #{mlp_pallas.1} parent=11 // pred_check_branch
          %187 = sbr.rel (%p185) target = $region24
        $region23: #{mlp_pallas.1} parent=11 // pred_region
          %s189 = ssub.s32 4096, 4096
          %190 = vsyncadd [#allocation6], %s189
          %s191 = sshll.u32 [#allocation7], 4
          %s192 = int_to_ptr.vmem [resolvable:$true] %s191
          %197 = dma.hbm_to_vmem [thread:$0]  %s3, 4096, %s192, [#allocation6], 64, 64, 4
        $region24: #{mlp_pallas.1} parent=11 // pred_fallthru
          _
        // Predicated region
        $region25: #{mlp_pallas.1} parent=11 // pred_check
          %p198 = pneg %p128
        $region26: #{mlp_pallas.1} parent=11 // pred_check_branch
          %200 = sbr.rel (%p198) target = $region28
        $region27: #{mlp_pallas.1} parent=11 // pred_region
          _
        $region28: #{mlp_pallas.1} parent=11 // pred_fallthru
          _
      $region12: #{mlp_pallas.1} parent=5 // pred_fallthru
        _
      %p201 = scmp.lt.s32.totalorder %s18, 2
      // Predicated region
      $region29: #{mlp_pallas.1} parent=5 // pred_check
        %p202 = pneg %p201
      $region30: #{mlp_pallas.1} parent=5 // pred_check_branch
        %204 = sbr.rel (%p202) target = $region32
      $region31: #{mlp_pallas.1} parent=5 // pred_region
        // Predicated region
        $region33: #{mlp_pallas.1} parent=31 // pred_check
          %p205 = pneg %p38
        $region34: #{mlp_pallas.1} parent=31 // pred_check_branch
          %207 = sbr.rel (%p205) target = $region36
        $region35: #{mlp_pallas.1} parent=31 // pred_region
          %s208 = sand.u32 %s28, 1
          %s209 = scalar_lea.sflag [#allocation3], %s208
          %s210 = sand.u32 %s28, 1
          %s211 = smul.addr %s210, 128
          %s212 = scalar_lea.vmem [#allocation2], %s211
          %s213 = smul.u32 16, %s18
          %s215 = ssub.s32 2048, 2048
          %216 = vsyncadd %s209, %s215
          %s217 = smul.addr %s213, 128
          %s218 = scalar_lea.hbm %s0, %s217
          %s219 = sshll.u32 %s212, 4
          %s220 = int_to_ptr.vmem [resolvable:$true] %s219
          %225 = dma.hbm_to_vmem [thread:$0]  %s218, 2048, %s220, %s209, 128, 128, 8
        $region36: #{mlp_pallas.1} parent=31 // pred_fallthru
          _
      $region32: #{mlp_pallas.1} parent=5 // pred_fallthru
        _
      %p226 = scmp.le.s32.totalorder 1, %s18
      %p227 = scmp.lt.s32.totalorder %s18, 3
      %p228 = pnand %p226, %p227
      %p229 = pneg %p228
      // Predicated region
      $region37: #{mlp_pallas.1} parent=5 // pred_check
        _
      $region38: #{mlp_pallas.1} parent=5 // pred_check_branch
        %231 = sbr.rel (%p228) target = $region40
      $region39: #{mlp_pallas.1} parent=5 // pred_region
        %s232 = ssub.s32 %s18, 1
        %s233 = sand.u32 %s31, 1
        %s234 = scalar_lea.sflag [#allocation3], %s233
        %s235 = sand.u32 %s31, 1
        %s236 = smul.addr %s235, 128
        %s237 = scalar_lea.vmem [#allocation2], %s236
        // Predicated region
        $region41: #{mlp_pallas.1} parent=39 // pred_check
          %p238 = pneg %p44
        $region42: #{mlp_pallas.1} parent=39 // pred_check_branch
          %240 = sbr.rel (%p238) target = $region44
        $region43: #{mlp_pallas.1} parent=39 // pred_region
          %241 = dma.done %s234, 2048
        $region44: #{mlp_pallas.1} parent=39 // pred_fallthru
          _
        // Predicated region
        $region45: #{mlp_pallas.1} parent=39 // pred_check
          %p242 = pneg %p65
        $region46: #{mlp_pallas.1} parent=39 // pred_check_branch
          %244 = sbr.rel (%p242) target = $region48
        $region47: #{mlp_pallas.1} parent=39 // pred_region
          %245 = dma.done [#allocation6], 4096
        $region48: #{mlp_pallas.1} parent=39 // pred_fallthru
          _
        // Predicated region
        $region49: #{mlp_pallas.1} parent=39 // pred_check
          %p246 = pneg %p107
        $region50: #{mlp_pallas.1} parent=39 // pred_check_branch
          %248 = sbr.rel (%p246) target = $region52
        $region51: #{mlp_pallas.1} parent=39 // pred_region
          %249 = dma.done [#allocation6], 4096
        $region52: #{mlp_pallas.1} parent=39 // pred_fallthru
          _
        %s250 = sand.u32 %s31, 1
        %s251 = scalar_lea.sflag [#allocation3], %s250
        %s252 = sand.u32 %s31, 1
        %s253 = smul.addr %s252, 128
        %s254 = scalar_lea.vmem [#allocation2], %s253
        %p255 = pneg %p44
        %p256 = pneg %p41
        %p257 = pneg %p65
        %p258 = pneg %p62
        %p259 = pneg %p86
        %p260 = pneg %p83
        %p261 = pneg %p107
        %p262 = pneg %p104
        %p263 = pneg %p128
        %p264 = pneg %p125
        %p265 = pneg %p154
        %p266 = pneg %p151
        %s267 = sand.u32 %s141, 1
        %s268 = scalar_lea.sflag [#allocation4], %s267
        %s269 = sand.u32 %s141, 1
        %s270 = smul.addr %s269, 128
        %s271 = scalar_lea.vmem [#allocation8], %s270
        %s272 = smul.u32 16, %s23
        %s273 = smul.u32 16, %s23
        %v275 = vld [vmem:[%s237] sm:$0xff]
        %v276 = vld [vmem:[%s237 + $0x8] sm:$0xff]
        %v277 = vld [vmem:[%s237 + $0x10] sm:$0xff]
        %v278 = vld [vmem:[%s237 + $0x18] sm:$0xff]
        %v279 = vld [vmem:[%s237 + $0x20] sm:$0xff]
        %v280 = vld [vmem:[%s237 + $0x28] sm:$0xff]
        %v281 = vld [vmem:[%s237 + $0x30] sm:$0xff]
        %v282 = vld [vmem:[%s237 + $0x38] sm:$0xff]
        %v283 = vld [vmem:[%s237 + $0x40] sm:$0xff]
        %v284 = vld [vmem:[%s237 + $0x48] sm:$0xff]
        %v285 = vld [vmem:[%s237 + $0x50] sm:$0xff]
        %v286 = vld [vmem:[%s237 + $0x58] sm:$0xff]
        %v287 = vld [vmem:[%s237 + $0x60] sm:$0xff]
        %v288 = vld [vmem:[%s237 + $0x68] sm:$0xff]
        %v289 = vld [vmem:[%s237 + $0x70] sm:$0xff]
        %v290 = vld [vmem:[%s237 + $0x78] sm:$0xff]
        %v291 = vpack.c.bf16 %v276, %v275
        %v292 = vpack.c.bf16 %v278, %v277
        %v293 = vpack.c.bf16 %v280, %v279
        %v294 = vpack.c.bf16 %v282, %v281
        %v295 = vpack.c.bf16 %v284, %v283
        %v296 = vpack.c.bf16 %v286, %v285
        %v297 = vpack.c.bf16 %v288, %v287
        %v298 = vpack.c.bf16 %v290, %v289
        %v299 = vld [vmem:[#allocation5] sm:$0xff]
        %v300 = vld [vmem:[#allocation5 + $0x8] sm:$0xff]
        %v301 = vld [vmem:[#allocation5 + $0x10] sm:$0xff]
        %v302 = vld [vmem:[#allocation5 + $0x18] sm:$0xff]
        %v303 = vld [vmem:[#allocation5 + $0x20] sm:$0xff]
        %v304 = vld [vmem:[#allocation5 + $0x28] sm:$0xff]
        %v305 = vld [vmem:[#allocation5 + $0x30] sm:$0xff]
        %v306 = vld [vmem:[#allocation5 + $0x38] sm:$0xff]
        %v307 = vld [vmem:[#allocation5 + $0x40] sm:$0xff]
        %v308 = vld [vmem:[#allocation5 + $0x48] sm:$0xff]
        %v309 = vld [vmem:[#allocation5 + $0x50] sm:$0xff]
        %v310 = vld [vmem:[#allocation5 + $0x58] sm:$0xff]
        %v311 = vld [vmem:[#allocation5 + $0x60] sm:$0xff]
        %v312 = vld [vmem:[#allocation5 + $0x68] sm:$0xff]
        %v313 = vld [vmem:[#allocation5 + $0x70] sm:$0xff]
        %v314 = vld [vmem:[#allocation5 + $0x78] sm:$0xff]
        %v315 = vld [vmem:[#allocation5 + $0x80] sm:$0xff]
        %v316 = vld [vmem:[#allocation5 + $0x88] sm:$0xff]
        %v317 = vld [vmem:[#allocation5 + $0x90] sm:$0xff]
        %v318 = vld [vmem:[#allocation5 + $0x98] sm:$0xff]
        %v319 = vld [vmem:[#allocation5 + $0xa0] sm:$0xff]
        %v320 = vld [vmem:[#allocation5 + $0xa8] sm:$0xff]
        %v321 = vld [vmem:[#allocation5 + $0xb0] sm:$0xff]
        %v322 = vld [vmem:[#allocation5 + $0xb8] sm:$0xff]
        %v323 = vld [vmem:[#allocation5 + $0xc0] sm:$0xff]
        %v324 = vld [vmem:[#allocation5 + $0xc8] sm:$0xff]
        %v325 = vld [vmem:[#allocation5 + $0xd0] sm:$0xff]
        %v326 = vld [vmem:[#allocation5 + $0xd8] sm:$0xff]
        %v327 = vld [vmem:[#allocation5 + $0xe0] sm:$0xff]
        %v328 = vld [vmem:[#allocation5 + $0xe8] sm:$0xff]
        %v329 = vld [vmem:[#allocation5 + $0xf0] sm:$0xff]
        %v330 = vld [vmem:[#allocation5 + $0xf8] sm:$0xff]
        %v331 = vld [vmem:[%s2] sm:$0xf]
        %v333 = vlaneseq
        %v334 = vshrl.u32 %v333, 7
        %v335 = vsub.s32 0, %v334
        %v336 = vrot.slane %v331, %v335
        %v337 = vlaneseq
        %v338 = vshrl.u32 %v337, 7
        %v339 = vsub.s32 1, %v338
        %v340 = vrot.slane %v331, %v339
        %v341 = vlaneseq
        %v342 = vshrl.u32 %v341, 7
        %v343 = vsub.s32 2, %v342
        %v344 = vrot.slane %v331, %v343
        %v345 = vlaneseq
        %v346 = vshrl.u32 %v345, 7
        %v347 = vsub.s32 3, %v346
        %v348 = vrot.slane %v331, %v347
        %v385 = vunpack.c.l.b16 %v299
        %v386 = vunpack.c.h.b16 %v299
        %v387 = vunpack.c.l.b16 %v300
        %v388 = vunpack.c.h.b16 %v300
        %v389 = vunpack.c.l.b16 %v301
        %v390 = vunpack.c.h.b16 %v301
        %v391 = vunpack.c.l.b16 %v302
        %v392 = vunpack.c.h.b16 %v302
        %v393 = vunpack.c.l.b16 %v303
        %v394 = vunpack.c.h.b16 %v303
        %v395 = vunpack.c.l.b16 %v304
        %v396 = vunpack.c.h.b16 %v304
        %v397 = vunpack.c.l.b16 %v305
        %v398 = vunpack.c.h.b16 %v305
        %v399 = vunpack.c.l.b16 %v306
        %v400 = vunpack.c.h.b16 %v306
        %v401 = vunpack.c.l.b16 %v307
        %v402 = vunpack.c.h.b16 %v307
        %v403 = vunpack.c.l.b16 %v308
        %v404 = vunpack.c.h.b16 %v308
        %v405 = vunpack.c.l.b16 %v309
        %v406 = vunpack.c.h.b16 %v309
        %v407 = vunpack.c.l.b16 %v310
        %v408 = vunpack.c.h.b16 %v310
        %v409 = vunpack.c.l.b16 %v311
        %v410 = vunpack.c.h.b16 %v311
        %v411 = vunpack.c.l.b16 %v312
        %v412 = vunpack.c.h.b16 %v312
        %v413 = vunpack.c.l.b16 %v313
        %v414 = vunpack.c.h.b16 %v313
        %v415 = vunpack.c.l.b16 %v314
        %v416 = vunpack.c.h.b16 %v314
        %v417 = vunpack.c.l.b16 %v315
        %v418 = vunpack.c.h.b16 %v315
        %v419 = vunpack.c.l.b16 %v316
        %v420 = vunpack.c.h.b16 %v316
        %v421 = vunpack.c.l.b16 %v317
        %v422 = vunpack.c.h.b16 %v317
        %v423 = vunpack.c.l.b16 %v318
        %v424 = vunpack.c.h.b16 %v318
        %v425 = vunpack.c.l.b16 %v319
        %v426 = vunpack.c.h.b16 %v319
        %v427 = vunpack.c.l.b16 %v320
        %v428 = vunpack.c.h.b16 %v320
        %v429 = vunpack.c.l.b16 %v321
        %v430 = vunpack.c.h.b16 %v321
        %v431 = vunpack.c.l.b16 %v322
        %v432 = vunpack.c.h.b16 %v322
        %v433 = vunpack.c.l.b16 %v323
        %v434 = vunpack.c.h.b16 %v323
        %v435 = vunpack.c.l.b16 %v324
        %v436 = vunpack.c.h.b16 %v324
        %v437 = vunpack.c.l.b16 %v325
        %v438 = vunpack.c.h.b16 %v325
        %v439 = vunpack.c.l.b16 %v326
        %v440 = vunpack.c.h.b16 %v326
        %v441 = vunpack.c.l.b16 %v327
        %v442 = vunpack.c.h.b16 %v327
        %v443 = vunpack.c.l.b16 %v328
        %v444 = vunpack.c.h.b16 %v328
        %v445 = vunpack.c.l.b16 %v329
        %v446 = vunpack.c.h.b16 %v329
        %v447 = vunpack.c.l.b16 %v330
        %v448 = vunpack.c.h.b16 %v330
        %v449 = vpack.c.b16 %v389, %v385
        %v450 = vpack.c.b16 %v390, %v386
        %v451 = vpack.c.b16 %v391, %v387
        %v452 = vpack.c.b16 %v392, %v388
        %v453 = vpack.c.b16 %v397, %v393
        %v454 = vpack.c.b16 %v398, %v394
        %v455 = vpack.c.b16 %v399, %v395
        %v456 = vpack.c.b16 %v400, %v396
        %v457 = vpack.c.b16 %v405, %v401
        %v458 = vpack.c.b16 %v406, %v402
        %v459 = vpack.c.b16 %v407, %v403
        %v460 = vpack.c.b16 %v408, %v404
        %v461 = vpack.c.b16 %v413, %v409
        %v462 = vpack.c.b16 %v414, %v410
        %v463 = vpack.c.b16 %v415, %v411
        %v464 = vpack.c.b16 %v416, %v412
        %v465 = vpack.c.b16 %v421, %v417
        %v466 = vpack.c.b16 %v422, %v418
        %v467 = vpack.c.b16 %v423, %v419
        %v468 = vpack.c.b16 %v424, %v420
        %v469 = vpack.c.b16 %v429, %v425
        %v470 = vpack.c.b16 %v430, %v426
        %v471 = vpack.c.b16 %v431, %v427
        %v472 = vpack.c.b16 %v432, %v428
        %v473 = vpack.c.b16 %v437, %v433
        %v474 = vpack.c.b16 %v438, %v434
        %v475 = vpack.c.b16 %v439, %v435
        %v476 = vpack.c.b16 %v440, %v436
        %v477 = vpack.c.b16 %v445, %v441
        %v478 = vpack.c.b16 %v446, %v442
        %v479 = vpack.c.b16 %v447, %v443
        %v480 = vpack.c.b16 %v448, %v444
        %513 = vmatprep.subr.bf16.mxu0 %v450
        %514 = vmatpush1.bf16.msra.mxu0 %v449
        %515 = vmatprep.subr.bf16.mxu0 %v454
        %516 = vmatpush1.bf16.msra.mxu0 %v453
        %517 = vmatprep.subr.bf16.mxu0 %v458
        %518 = vmatpush1.bf16.msra.mxu0 %v457
        %519 = vmatprep.subr.bf16.mxu0 %v462
        %520 = vmatpush1.bf16.msra.mxu0 %v461
        %521 = vmatprep.subr.bf16.mxu0 %v466
        %522 = vmatpush1.bf16.msra.mxu0 %v465
        %523 = vmatprep.subr.bf16.mxu0 %v470
        %524 = vmatpush1.bf16.msra.mxu0 %v469
        %525 = vmatprep.subr.bf16.mxu0 %v474
        %526 = vmatpush1.bf16.msra.mxu0 %v473
        %527 = vmatprep.subr.bf16.mxu0 %v478
        %528 = vmatpush1.bf16.msra.mxu0 %v477
        %529 = vmatprep.subr.bf16.mxu0 0
        %530 = vmatpush1.bf16.msra.mxu0 0
        %531 = vmatprep.subr.bf16.mxu0 0
        %532 = vmatpush1.bf16.msra.mxu0 0
        %533 = vmatprep.subr.bf16.mxu0 0
        %534 = vmatpush1.bf16.msra.mxu0 0
        %535 = vmatprep.subr.bf16.mxu0 0
        %536 = vmatpush1.bf16.msra.mxu0 0
        %537 = vmatprep.subr.bf16.mxu0 0
        %538 = vmatpush1.bf16.msra.mxu0 0
        %539 = vmatprep.subr.bf16.mxu0 0
        %540 = vmatpush1.bf16.msra.mxu0 0
        %541 = vmatprep.subr.bf16.mxu0 0
        %542 = vmatpush1.bf16.msra.mxu0 0
        %543 = vmatprep.subr.bf16.mxu0 0
        %544 = vmatpush1.bf16.msra.mxu0 0
        %545 = vmatprep.mubr.bf16.mxu0 0
        %546 = vmatmul.mubr.bf16.gmra.mrb[0].mxu0 %v291
        %v547 = vpop.f32.mrb[0].mxu0
        %v548 = vadd.f32 %v336, %v547
        %v549 = vpop.f32.mrb[0].mxu0
        %v550 = vadd.f32 %v340, %v549
        %v551 = vpop.f32.mrb[0].mxu0
        %v552 = vadd.f32 %v336, %v551
        %v553 = vpop.f32.mrb[0].mxu0
        %v554 = vadd.f32 %v340, %v553
        %555 = vmatprep.mubr.bf16.mxu0 0
        %556 = vmatmul.mubr.bf16.gmra.mrb[0].mxu0 %v292
        %v557 = vpop.f32.mrb[0].mxu0
        %v558 = vadd.f32 %v336, %v557
        %v559 = vpop.f32.mrb[0].mxu0
        %v560 = vadd.f32 %v340, %v559
        %v561 = vpop.f32.mrb[0].mxu0
        %v562 = vadd.f32 %v336, %v561
        %v563 = vpop.f32.mrb[0].mxu0
        %v564 = vadd.f32 %v340, %v563
        %565 = vmatprep.mubr.bf16.mxu0 0
        %566 = vmatmul.mubr.bf16.gmra.mrb[0].mxu0 %v293
        %v567 = vpop.f32.mrb[0].mxu0
        %v568 = vadd.f32 %v336, %v567
        %v569 = vpop.f32.mrb[0].mxu0
        %v570 = vadd.f32 %v340, %v569
        %v571 = vpop.f32.mrb[0].mxu0
        %v572 = vadd.f32 %v336, %v571
        %v573 = vpop.f32.mrb[0].mxu0
        %v574 = vadd.f32 %v340, %v573
        %575 = vmatprep.mubr.bf16.mxu0 0
        %576 = vmatmul.mubr.bf16.gmra.mrb[0].mxu0 %v294
        %v577 = vpop.f32.mrb[0].mxu0
        %v578 = vadd.f32 %v336, %v577
        %v579 = vpop.f32.mrb[0].mxu0
        %v580 = vadd.f32 %v340, %v579
        %v581 = vpop.f32.mrb[0].mxu0
        %v582 = vadd.f32 %v336, %v581
        %v583 = vpop.f32.mrb[0].mxu0
        %v584 = vadd.f32 %v340, %v583
        %585 = vmatprep.mubr.bf16.mxu0 0
        %586 = vmatmul.mubr.bf16.gmra.mrb[0].mxu0 %v295
        %v587 = vpop.f32.mrb[0].mxu0
        %v588 = vadd.f32 %v336, %v587
        %v589 = vpop.f32.mrb[0].mxu0
        %v590 = vadd.f32 %v340, %v589
        %v591 = vpop.f32.mrb[0].mxu0
        %v592 = vadd.f32 %v336, %v591
        %v593 = vpop.f32.mrb[0].mxu0
        %v594 = vadd.f32 %v340, %v593
        %595 = vmatprep.mubr.bf16.mxu0 0
        %596 = vmatmul.mubr.bf16.gmra.mrb[0].mxu0 %v296
        %v597 = vpop.f32.mrb[0].mxu0
        %v598 = vadd.f32 %v336, %v597
        %v599 = vpop.f32.mrb[0].mxu0
        %v600 = vadd.f32 %v340, %v599
        %v601 = vpop.f32.mrb[0].mxu0
        %v602 = vadd.f32 %v336, %v601
        %v603 = vpop.f32.mrb[0].mxu0
        %v604 = vadd.f32 %v340, %v603
        %605 = vmatprep.mubr.bf16.mxu0 0
        %606 = vmatmul.mubr.bf16.gmra.mrb[0].mxu0 %v297
        %v607 = vpop.f32.mrb[0].mxu0
        %v608 = vadd.f32 %v336, %v607
        %v609 = vpop.f32.mrb[0].mxu0
        %v610 = vadd.f32 %v340, %v609
        %v611 = vpop.f32.mrb[0].mxu0
        %v612 = vadd.f32 %v336, %v611
        %v613 = vpop.f32.mrb[0].mxu0
        %v614 = vadd.f32 %v340, %v613
        %615 = vmatprep.mubr.bf16.mxu0 0
        %616 = vmatmul.mubr.bf16.gmra.mrb[0].mxu0 %v298
        %v617 = vpop.f32.mrb[0].mxu0
        %v618 = vadd.f32 %v336, %v617
        %v619 = vpop.f32.mrb[0].mxu0
        %v620 = vadd.f32 %v340, %v619
        %v621 = vpop.f32.mrb[0].mxu0
        %v622 = vadd.f32 %v336, %v621
        %v623 = vpop.f32.mrb[0].mxu0
        %v624 = vadd.f32 %v340, %v623
        %625 = vdwg.mxu0
        %626 = vmatprep.subr.bf16.mxu0 %v452
        %627 = vmatpush1.bf16.msra.mxu0 %v451
        %628 = vmatprep.subr.bf16.mxu0 %v456
        %629 = vmatpush1.bf16.msra.mxu0 %v455
        %630 = vmatprep.subr.bf16.mxu0 %v460
        %631 = vmatpush1.bf16.msra.mxu0 %v459
        %632 = vmatprep.subr.bf16.mxu0 %v464
        %633 = vmatpush1.bf16.msra.mxu0 %v463
        %634 = vmatprep.subr.bf16.mxu0 %v468
        %635 = vmatpush1.bf16.msra.mxu0 %v467
        %636 = vmatprep.subr.bf16.mxu0 %v472
        %637 = vmatpush1.bf16.msra.mxu0 %v471
        %638 = vmatprep.subr.bf16.mxu0 %v476
        %639 = vmatpush1.bf16.msra.mxu0 %v475
        %640 = vmatprep.subr.bf16.mxu0 %v480
        %641 = vmatpush1.bf16.msra.mxu0 %v479
        %642 = vmatprep.subr.bf16.mxu0 0
        %643 = vmatpush1.bf16.msra.mxu0 0
        %644 = vmatprep.subr.bf16.mxu0 0
        %645 = vmatpush1.bf16.msra.mxu0 0
        %646 = vmatprep.subr.bf16.mxu0 0
        %647 = vmatpush1.bf16.msra.mxu0 0
        %648 = vmatprep.subr.bf16.mxu0 0
        %649 = vmatpush1.bf16.msra.mxu0 0
        %650 = vmatprep.subr.bf16.mxu0 0
        %651 = vmatpush1.bf16.msra.mxu0 0
        %652 = vmatprep.subr.bf16.mxu0 0
        %653 = vmatpush1.bf16.msra.mxu0 0
        %654 = vmatprep.subr.bf16.mxu0 0
        %655 = vmatpush1.bf16.msra.mxu0 0
        %656 = vmatprep.subr.bf16.mxu0 0
        %657 = vmatpush1.bf16.msra.mxu0 0
        %658 = vmatprep.mubr.bf16.mxu0 0
        %659 = vmatmul.mubr.bf16.gmra.mrb[0].mxu0 %v291
        %v660 = vpop.f32.mrb[0].mxu0
        %v661 = vadd.f32 %v344, %v660
        %v662 = vpop.f32.mrb[0].mxu0
        %v663 = vadd.f32 %v348, %v662
        %v664 = vpop.f32.mrb[0].mxu0
        %v665 = vadd.f32 %v344, %v664
        %v666 = vpop.f32.mrb[0].mxu0
        %v667 = vadd.f32 %v348, %v666
        %668 = vmatprep.mubr.bf16.mxu0 0
        %669 = vmatmul.mubr.bf16.gmra.mrb[0].mxu0 %v292
        %v670 = vpop.f32.mrb[0].mxu0
        %v671 = vadd.f32 %v344, %v670
        %v672 = vpop.f32.mrb[0].mxu0
        %v673 = vadd.f32 %v348, %v672
        %v674 = vpop.f32.mrb[0].mxu0
        %v675 = vadd.f32 %v344, %v674
        %v676 = vpop.f32.mrb[0].mxu0
        %v677 = vadd.f32 %v348, %v676
        %678 = vmatprep.mubr.bf16.mxu0 0
        %679 = vmatmul.mubr.bf16.gmra.mrb[0].mxu0 %v293
        %v680 = vpop.f32.mrb[0].mxu0
        %v681 = vadd.f32 %v344, %v680
        %v682 = vpop.f32.mrb[0].mxu0
        %v683 = vadd.f32 %v348, %v682
        %v684 = vpop.f32.mrb[0].mxu0
        %v685 = vadd.f32 %v344, %v684
        %v686 = vpop.f32.mrb[0].mxu0
        %v687 = vadd.f32 %v348, %v686
        %688 = vmatprep.mubr.bf16.mxu0 0
        %689 = vmatmul.mubr.bf16.gmra.mrb[0].mxu0 %v294
        %v690 = vpop.f32.mrb[0].mxu0
        %v691 = vadd.f32 %v344, %v690
        %v692 = vpop.f32.mrb[0].mxu0
        %v693 = vadd.f32 %v348, %v692
        %v694 = vpop.f32.mrb[0].mxu0
        %v695 = vadd.f32 %v344, %v694
        %v696 = vpop.f32.mrb[0].mxu0
        %v697 = vadd.f32 %v348, %v696
        %698 = vmatprep.mubr.bf16.mxu0 0
        %699 = vmatmul.mubr.bf16.gmra.mrb[0].mxu0 %v295
        %v700 = vpop.f32.mrb[0].mxu0
        %v701 = vadd.f32 %v344, %v700
        %v702 = vpop.f32.mrb[0].mxu0
        %v703 = vadd.f32 %v348, %v702
        %v704 = vpop.f32.mrb[0].mxu0
        %v705 = vadd.f32 %v344, %v704
        %v706 = vpop.f32.mrb[0].mxu0
        %v707 = vadd.f32 %v348, %v706
        %708 = vmatprep.mubr.bf16.mxu0 0
        %709 = vmatmul.mubr.bf16.gmra.mrb[0].mxu0 %v296
        %v710 = vpop.f32.mrb[0].mxu0
        %v711 = vadd.f32 %v344, %v710
        %v712 = vpop.f32.mrb[0].mxu0
        %v713 = vadd.f32 %v348, %v712
        %v714 = vpop.f32.mrb[0].mxu0
        %v715 = vadd.f32 %v344, %v714
        %v716 = vpop.f32.mrb[0].mxu0
        %v717 = vadd.f32 %v348, %v716
        %718 = vmatprep.mubr.bf16.mxu0 0
        %719 = vmatmul.mubr.bf16.gmra.mrb[0].mxu0 %v297
        %v720 = vpop.f32.mrb[0].mxu0
        %v721 = vadd.f32 %v344, %v720
        %v722 = vpop.f32.mrb[0].mxu0
        %v723 = vadd.f32 %v348, %v722
        %v724 = vpop.f32.mrb[0].mxu0
        %v725 = vadd.f32 %v344, %v724
        %v726 = vpop.f32.mrb[0].mxu0
        %v727 = vadd.f32 %v348, %v726
        %728 = vmatprep.mubr.bf16.mxu0 0
        %729 = vmatmul.mubr.bf16.gmra.mrb[0].mxu0 %v298
        %v730 = vpop.f32.mrb[0].mxu0
        %v731 = vadd.f32 %v344, %v730
        %v732 = vpop.f32.mrb[0].mxu0
        %v733 = vadd.f32 %v348, %v732
        %v734 = vpop.f32.mrb[0].mxu0
        %v735 = vadd.f32 %v344, %v734
        %v736 = vpop.f32.mrb[0].mxu0
        %v737 = vadd.f32 %v348, %v736
        %738 = vdwg.mxu0
        %v739 = vmul.f32 %v548, 0.5
        %v740 = vmul.f32 %v550, 0.5
        %v741 = vmul.f32 %v661, 0.5
        %v742 = vmul.f32 %v663, 0.5
        %v743 = vmul.f32 %v552, 0.5
        %v744 = vmul.f32 %v554, 0.5
        %v745 = vmul.f32 %v665, 0.5
        %v746 = vmul.f32 %v667, 0.5
        %v747 = vmul.f32 %v558, 0.5
        %v748 = vmul.f32 %v560, 0.5
        %v749 = vmul.f32 %v671, 0.5
        %v750 = vmul.f32 %v673, 0.5
        %v751 = vmul.f32 %v562, 0.5
        %v752 = vmul.f32 %v564, 0.5
        %v753 = vmul.f32 %v675, 0.5
        %v754 = vmul.f32 %v677, 0.5
        %v755 = vmul.f32 %v568, 0.5
        %v756 = vmul.f32 %v570, 0.5
        %v757 = vmul.f32 %v681, 0.5
        %v758 = vmul.f32 %v683, 0.5
        %v759 = vmul.f32 %v572, 0.5
        %v760 = vmul.f32 %v574, 0.5
        %v761 = vmul.f32 %v685, 0.5
        %v762 = vmul.f32 %v687, 0.5
        %v763 = vmul.f32 %v578, 0.5
        %v764 = vmul.f32 %v580, 0.5
        %v765 = vmul.f32 %v691, 0.5
        %v766 = vmul.f32 %v693, 0.5
        %v767 = vmul.f32 %v582, 0.5
        %v768 = vmul.f32 %v584, 0.5
        %v769 = vmul.f32 %v695, 0.5
        %v770 = vmul.f32 %v697, 0.5
        %v771 = vmul.f32 %v588, 0.5
        %v772 = vmul.f32 %v590, 0.5
        %v773 = vmul.f32 %v701, 0.5
        %v774 = vmul.f32 %v703, 0.5
        %v775 = vmul.f32 %v592, 0.5
        %v776 = vmul.f32 %v594, 0.5
        %v777 = vmul.f32 %v705, 0.5
        %v778 = vmul.f32 %v707, 0.5
        %v779 = vmul.f32 %v598, 0.5
        %v780 = vmul.f32 %v600, 0.5
        %v781 = vmul.f32 %v711, 0.5
        %v782 = vmul.f32 %v713, 0.5
        %v783 = vmul.f32 %v602, 0.5
        %v784 = vmul.f32 %v604, 0.5
        %v785 = vmul.f32 %v715, 0.5
        %v786 = vmul.f32 %v717, 0.5
        %v787 = vmul.f32 %v608, 0.5
        %v788 = vmul.f32 %v610, 0.5
        %v789 = vmul.f32 %v721, 0.5
        %v790 = vmul.f32 %v723, 0.5
        %v791 = vmul.f32 %v612, 0.5
        %v792 = vmul.f32 %v614, 0.5
        %v793 = vmul.f32 %v725, 0.5
        %v794 = vmul.f32 %v727, 0.5
        %v795 = vmul.f32 %v618, 0.5
        %v796 = vmul.f32 %v620, 0.5
        %v797 = vmul.f32 %v731, 0.5
        %v798 = vmul.f32 %v733, 0.5
        %v799 = vmul.f32 %v622, 0.5
        %v800 = vmul.f32 %v624, 0.5
        %v801 = vmul.f32 %v735, 0.5
        %v802 = vmul.f32 %v737, 0.5
        %v803 = vtanh.pop %v739
        %v804 = vtanh.pop %v740
        %v805 = vtanh.pop %v741
        %v806 = vtanh.pop %v742
        %v807 = vtanh.pop %v743
        %v808 = vtanh.pop %v744
        %v809 = vtanh.pop %v745
        %v810 = vtanh.pop %v746
        %v811 = vtanh.pop %v747
        %v812 = vtanh.pop %v748
        %v813 = vtanh.pop %v749
        %v814 = vtanh.pop %v750
        %v815 = vtanh.pop %v751
        %v816 = vtanh.pop %v752
        %v817 = vtanh.pop %v753
        %v818 = vtanh.pop %v754
        %v819 = vtanh.pop %v755
        %v820 = vtanh.pop %v756
        %v821 = vtanh.pop %v757
        %v822 = vtanh.pop %v758
        %v823 = vtanh.pop %v759
        %v824 = vtanh.pop %v760
        %v825 = vtanh.pop %v761
        %v826 = vtanh.pop %v762
        %v827 = vtanh.pop %v763
        %v828 = vtanh.pop %v764
        %v829 = vtanh.pop %v765
        %v830 = vtanh.pop %v766
        %v831 = vtanh.pop %v767
        %v832 = vtanh.pop %v768
        %v833 = vtanh.pop %v769
        %v834 = vtanh.pop %v770
        %v835 = vtanh.pop %v771
        %v836 = vtanh.pop %v772
        %v837 = vtanh.pop %v773
        %v838 = vtanh.pop %v774
        %v839 = vtanh.pop %v775
        %v840 = vtanh.pop %v776
        %v841 = vtanh.pop %v777
        %v842 = vtanh.pop %v778
        %v843 = vtanh.pop %v779
        %v844 = vtanh.pop %v780
        %v845 = vtanh.pop %v781
        %v846 = vtanh.pop %v782
        %v847 = vtanh.pop %v783
        %v848 = vtanh.pop %v784
        %v849 = vtanh.pop %v785
        %v850 = vtanh.pop %v786
        %v851 = vtanh.pop %v787
        %v852 = vtanh.pop %v788
        %v853 = vtanh.pop %v789
        %v854 = vtanh.pop %v790
        %v855 = vtanh.pop %v791
        %v856 = vtanh.pop %v792
        %v857 = vtanh.pop %v793
        %v858 = vtanh.pop %v794
        %v859 = vtanh.pop %v795
        %v860 = vtanh.pop %v796
        %v861 = vtanh.pop %v797
        %v862 = vtanh.pop %v798
        %v863 = vtanh.pop %v799
        %v864 = vtanh.pop %v800
        %v865 = vtanh.pop %v801
        %v866 = vtanh.pop %v802
        %v867 = vadd.f32 %v803, 1.0
        %v868 = vadd.f32 %v804, 1.0
        %v869 = vadd.f32 %v805, 1.0
        %v870 = vadd.f32 %v806, 1.0
        %v871 = vadd.f32 %v807, 1.0
        %v872 = vadd.f32 %v808, 1.0
        %v873 = vadd.f32 %v809, 1.0
        %v874 = vadd.f32 %v810, 1.0
        %v875 = vadd.f32 %v811, 1.0
        %v876 = vadd.f32 %v812, 1.0
        %v877 = vadd.f32 %v813, 1.0
        %v878 = vadd.f32 %v814, 1.0
        %v879 = vadd.f32 %v815, 1.0
        %v880 = vadd.f32 %v816, 1.0
        %v881 = vadd.f32 %v817, 1.0
        %v882 = vadd.f32 %v818, 1.0
        %v883 = vadd.f32 %v819, 1.0
        %v884 = vadd.f32 %v820, 1.0
        %v885 = vadd.f32 %v821, 1.0
        %v886 = vadd.f32 %v822, 1.0
        %v887 = vadd.f32 %v823, 1.0
        %v888 = vadd.f32 %v824, 1.0
        %v889 = vadd.f32 %v825, 1.0
        %v890 = vadd.f32 %v826, 1.0
        %v891 = vadd.f32 %v827, 1.0
        %v892 = vadd.f32 %v828, 1.0
        %v893 = vadd.f32 %v829, 1.0
        %v894 = vadd.f32 %v830, 1.0
        %v895 = vadd.f32 %v831, 1.0
        %v896 = vadd.f32 %v832, 1.0
        %v897 = vadd.f32 %v833, 1.0
        %v898 = vadd.f32 %v834, 1.0
        %v899 = vadd.f32 %v835, 1.0
        %v900 = vadd.f32 %v836, 1.0
        %v901 = vadd.f32 %v837, 1.0
        %v902 = vadd.f32 %v838, 1.0
        %v903 = vadd.f32 %v839, 1.0
        %v904 = vadd.f32 %v840, 1.0
        %v905 = vadd.f32 %v841, 1.0
        %v906 = vadd.f32 %v842, 1.0
        %v907 = vadd.f32 %v843, 1.0
        %v908 = vadd.f32 %v844, 1.0
        %v909 = vadd.f32 %v845, 1.0
        %v910 = vadd.f32 %v846, 1.0
        %v911 = vadd.f32 %v847, 1.0
        %v912 = vadd.f32 %v848, 1.0
        %v913 = vadd.f32 %v849, 1.0
        %v914 = vadd.f32 %v850, 1.0
        %v915 = vadd.f32 %v851, 1.0
        %v916 = vadd.f32 %v852, 1.0
        %v917 = vadd.f32 %v853, 1.0
        %v918 = vadd.f32 %v854, 1.0
        %v919 = vadd.f32 %v855, 1.0
        %v920 = vadd.f32 %v856, 1.0
        %v921 = vadd.f32 %v857, 1.0
        %v922 = vadd.f32 %v858, 1.0
        %v923 = vadd.f32 %v859, 1.0
        %v924 = vadd.f32 %v860, 1.0
        %v925 = vadd.f32 %v861, 1.0
        %v926 = vadd.f32 %v862, 1.0
        %v927 = vadd.f32 %v863, 1.0
        %v928 = vadd.f32 %v864, 1.0
        %v929 = vadd.f32 %v865, 1.0
        %v930 = vadd.f32 %v866, 1.0
        %v931 = vmul.f32 %v867, 0.5
        %v932 = vmul.f32 %v868, 0.5
        %v933 = vmul.f32 %v869, 0.5
        %v934 = vmul.f32 %v870, 0.5
        %v935 = vmul.f32 %v871, 0.5
        %v936 = vmul.f32 %v872, 0.5
        %v937 = vmul.f32 %v873, 0.5
        %v938 = vmul.f32 %v874, 0.5
        %v939 = vmul.f32 %v875, 0.5
        %v940 = vmul.f32 %v876, 0.5
        %v941 = vmul.f32 %v877, 0.5
        %v942 = vmul.f32 %v878, 0.5
        %v943 = vmul.f32 %v879, 0.5
        %v944 = vmul.f32 %v880, 0.5
        %v945 = vmul.f32 %v881, 0.5
        %v946 = vmul.f32 %v882, 0.5
        %v947 = vmul.f32 %v883, 0.5
        %v948 = vmul.f32 %v884, 0.5
        %v949 = vmul.f32 %v885, 0.5
        %v950 = vmul.f32 %v886, 0.5
        %v951 = vmul.f32 %v887, 0.5
        %v952 = vmul.f32 %v888, 0.5
        %v953 = vmul.f32 %v889, 0.5
        %v954 = vmul.f32 %v890, 0.5
        %v955 = vmul.f32 %v891, 0.5
        %v956 = vmul.f32 %v892, 0.5
        %v957 = vmul.f32 %v893, 0.5
        %v958 = vmul.f32 %v894, 0.5
        %v959 = vmul.f32 %v895, 0.5
        %v960 = vmul.f32 %v896, 0.5
        %v961 = vmul.f32 %v897, 0.5
        %v962 = vmul.f32 %v898, 0.5
        %v963 = vmul.f32 %v899, 0.5
        %v964 = vmul.f32 %v900, 0.5
        %v965 = vmul.f32 %v901, 0.5
        %v966 = vmul.f32 %v902, 0.5
        %v967 = vmul.f32 %v903, 0.5
        %v968 = vmul.f32 %v904, 0.5
        %v969 = vmul.f32 %v905, 0.5
        %v970 = vmul.f32 %v906, 0.5
        %v971 = vmul.f32 %v907, 0.5
        %v972 = vmul.f32 %v908, 0.5
        %v973 = vmul.f32 %v909, 0.5
        %v974 = vmul.f32 %v910, 0.5
        %v975 = vmul.f32 %v911, 0.5
        %v976 = vmul.f32 %v912, 0.5
        %v977 = vmul.f32 %v913, 0.5
        %v978 = vmul.f32 %v914, 0.5
        %v979 = vmul.f32 %v915, 0.5
        %v980 = vmul.f32 %v916, 0.5
        %v981 = vmul.f32 %v917, 0.5
        %v982 = vmul.f32 %v918, 0.5
        %v983 = vmul.f32 %v919, 0.5
        %v984 = vmul.f32 %v920, 0.5
        %v985 = vmul.f32 %v921, 0.5
        %v986 = vmul.f32 %v922, 0.5
        %v987 = vmul.f32 %v923, 0.5
        %v988 = vmul.f32 %v924, 0.5
        %v989 = vmul.f32 %v925, 0.5
        %v990 = vmul.f32 %v926, 0.5
        %v991 = vmul.f32 %v927, 0.5
        %v992 = vmul.f32 %v928, 0.5
        %v993 = vmul.f32 %v929, 0.5
        %v994 = vmul.f32 %v930, 0.5
        %v995 = vmul.f32 %v548, %v931
        %v996 = vmul.f32 %v550, %v932
        %v997 = vmul.f32 %v661, %v933
        %v998 = vmul.f32 %v663, %v934
        %v999 = vmul.f32 %v552, %v935
        %v1000 = vmul.f32 %v554, %v936
        %v1001 = vmul.f32 %v665, %v937
        %v1002 = vmul.f32 %v667, %v938
        %v1003 = vmul.f32 %v558, %v939
        %v1004 = vmul.f32 %v560, %v940
        %v1005 = vmul.f32 %v671, %v941
        %v1006 = vmul.f32 %v673, %v942
        %v1007 = vmul.f32 %v562, %v943
        %v1008 = vmul.f32 %v564, %v944
        %v1009 = vmul.f32 %v675, %v945
        %v1010 = vmul.f32 %v677, %v946
        %v1011 = vmul.f32 %v568, %v947
        %v1012 = vmul.f32 %v570, %v948
        %v1013 = vmul.f32 %v681, %v949
        %v1014 = vmul.f32 %v683, %v950
        %v1015 = vmul.f32 %v572, %v951
        %v1016 = vmul.f32 %v574, %v952
        %v1017 = vmul.f32 %v685, %v953
        %v1018 = vmul.f32 %v687, %v954
        %v1019 = vmul.f32 %v578, %v955
        %v1020 = vmul.f32 %v580, %v956
        %v1021 = vmul.f32 %v691, %v957
        %v1022 = vmul.f32 %v693, %v958
        %v1023 = vmul.f32 %v582, %v959
        %v1024 = vmul.f32 %v584, %v960
        %v1025 = vmul.f32 %v695, %v961
        %v1026 = vmul.f32 %v697, %v962
        %v1027 = vmul.f32 %v588, %v963
        %v1028 = vmul.f32 %v590, %v964
        %v1029 = vmul.f32 %v701, %v965
        %v1030 = vmul.f32 %v703, %v966
        %v1031 = vmul.f32 %v592, %v967
        %v1032 = vmul.f32 %v594, %v968
        %v1033 = vmul.f32 %v705, %v969
        %v1034 = vmul.f32 %v707, %v970
        %v1035 = vmul.f32 %v598, %v971
        %v1036 = vmul.f32 %v600, %v972
        %v1037 = vmul.f32 %v711, %v973
        %v1038 = vmul.f32 %v713, %v974
        %v1039 = vmul.f32 %v602, %v975
        %v1040 = vmul.f32 %v604, %v976
        %v1041 = vmul.f32 %v715, %v977
        %v1042 = vmul.f32 %v717, %v978
        %v1043 = vmul.f32 %v608, %v979
        %v1044 = vmul.f32 %v610, %v980
        %v1045 = vmul.f32 %v721, %v981
        %v1046 = vmul.f32 %v723, %v982
        %v1047 = vmul.f32 %v612, %v983
        %v1048 = vmul.f32 %v614, %v984
        %v1049 = vmul.f32 %v725, %v985
        %v1050 = vmul.f32 %v727, %v986
        %v1051 = vmul.f32 %v618, %v987
        %v1052 = vmul.f32 %v620, %v988
        %v1053 = vmul.f32 %v731, %v989
        %v1054 = vmul.f32 %v733, %v990
        %v1055 = vmul.f32 %v622, %v991
        %v1056 = vmul.f32 %v624, %v992
        %v1057 = vmul.f32 %v735, %v993
        %v1058 = vmul.f32 %v737, %v994
        %v1059 = vpack.c.bf16 %v999, %v995
        %v1060 = vpack.c.bf16 %v1000, %v996
        %v1061 = vpack.c.bf16 %v1001, %v997
        %v1062 = vpack.c.bf16 %v1002, %v998
        %v1063 = vpack.c.bf16 %v1007, %v1003
        %v1064 = vpack.c.bf16 %v1008, %v1004
        %v1065 = vpack.c.bf16 %v1009, %v1005
        %v1066 = vpack.c.bf16 %v1010, %v1006
        %v1067 = vpack.c.bf16 %v1015, %v1011
        %v1068 = vpack.c.bf16 %v1016, %v1012
        %v1069 = vpack.c.bf16 %v1017, %v1013
        %v1070 = vpack.c.bf16 %v1018, %v1014
        %v1071 = vpack.c.bf16 %v1023, %v1019
        %v1072 = vpack.c.bf16 %v1024, %v1020
        %v1073 = vpack.c.bf16 %v1025, %v1021
        %v1074 = vpack.c.bf16 %v1026, %v1022
        %v1075 = vpack.c.bf16 %v1031, %v1027
        %v1076 = vpack.c.bf16 %v1032, %v1028
        %v1077 = vpack.c.bf16 %v1033, %v1029
        %v1078 = vpack.c.bf16 %v1034, %v1030
        %v1079 = vpack.c.bf16 %v1039, %v1035
        %v1080 = vpack.c.bf16 %v1040, %v1036
        %v1081 = vpack.c.bf16 %v1041, %v1037
        %v1082 = vpack.c.bf16 %v1042, %v1038
        %v1083 = vpack.c.bf16 %v1047, %v1043
        %v1084 = vpack.c.bf16 %v1048, %v1044
        %v1085 = vpack.c.bf16 %v1049, %v1045
        %v1086 = vpack.c.bf16 %v1050, %v1046
        %v1087 = vpack.c.bf16 %v1055, %v1051
        %v1088 = vpack.c.bf16 %v1056, %v1052
        %v1089 = vpack.c.bf16 %v1057, %v1053
        %v1090 = vpack.c.bf16 %v1058, %v1054
        %v1091 = vld [vmem:[#allocation7] sm:$0xf]
        %v1092 = vld [vmem:[#allocation7 + $0x4] sm:$0xf]
        %v1093 = vld [vmem:[#allocation7 + $0x8] sm:$0xf]
        %v1094 = vld [vmem:[#allocation7 + $0xc] sm:$0xf]
        %v1095 = vld [vmem:[#allocation7 + $0x10] sm:$0xf]
        %v1096 = vld [vmem:[#allocation7 + $0x14] sm:$0xf]
        %v1097 = vld [vmem:[#allocation7 + $0x18] sm:$0xf]
        %v1098 = vld [vmem:[#allocation7 + $0x1c] sm:$0xf]
        %v1099 = vld [vmem:[#allocation7 + $0x20] sm:$0xf]
        %v1100 = vld [vmem:[#allocation7 + $0x24] sm:$0xf]
        %v1101 = vld [vmem:[#allocation7 + $0x28] sm:$0xf]
        %v1102 = vld [vmem:[#allocation7 + $0x2c] sm:$0xf]
        %v1103 = vld [vmem:[#allocation7 + $0x30] sm:$0xf]
        %v1104 = vld [vmem:[#allocation7 + $0x34] sm:$0xf]
        %v1105 = vld [vmem:[#allocation7 + $0x38] sm:$0xf]
        %v1106 = vld [vmem:[#allocation7 + $0x3c] sm:$0xf]
        %v1107 = vld [vmem:[#allocation7 + $0x40] sm:$0xf]
        %v1108 = vld [vmem:[#allocation7 + $0x44] sm:$0xf]
        %v1109 = vld [vmem:[#allocation7 + $0x48] sm:$0xf]
        %v1110 = vld [vmem:[#allocation7 + $0x4c] sm:$0xf]
        %v1111 = vld [vmem:[#allocation7 + $0x50] sm:$0xf]
        %v1112 = vld [vmem:[#allocation7 + $0x54] sm:$0xf]
        %v1113 = vld [vmem:[#allocation7 + $0x58] sm:$0xf]
        %v1114 = vld [vmem:[#allocation7 + $0x5c] sm:$0xf]
        %v1115 = vld [vmem:[#allocation7 + $0x60] sm:$0xf]
        %v1116 = vld [vmem:[#allocation7 + $0x64] sm:$0xf]
        %v1117 = vld [vmem:[#allocation7 + $0x68] sm:$0xf]
        %v1118 = vld [vmem:[#allocation7 + $0x6c] sm:$0xf]
        %v1119 = vld [vmem:[#allocation7 + $0x70] sm:$0xf]
        %v1120 = vld [vmem:[#allocation7 + $0x74] sm:$0xf]
        %v1121 = vld [vmem:[#allocation7 + $0x78] sm:$0xf]
        %v1122 = vld [vmem:[#allocation7 + $0x7c] sm:$0xf]
        %v1123 = vld [vmem:[#allocation7 + $0x80] sm:$0xf]
        %v1124 = vld [vmem:[#allocation7 + $0x84] sm:$0xf]
        %v1125 = vld [vmem:[#allocation7 + $0x88] sm:$0xf]
        %v1126 = vld [vmem:[#allocation7 + $0x8c] sm:$0xf]
        %v1127 = vld [vmem:[#allocation7 + $0x90] sm:$0xf]
        %v1128 = vld [vmem:[#allocation7 + $0x94] sm:$0xf]
        %v1129 = vld [vmem:[#allocation7 + $0x98] sm:$0xf]
        %v1130 = vld [vmem:[#allocation7 + $0x9c] sm:$0xf]
        %v1131 = vld [vmem:[#allocation7 + $0xa0] sm:$0xf]
        %v1132 = vld [vmem:[#allocation7 + $0xa4] sm:$0xf]
        %v1133 = vld [vmem:[#allocation7 + $0xa8] sm:$0xf]
        %v1134 = vld [vmem:[#allocation7 + $0xac] sm:$0xf]
        %v1135 = vld [vmem:[#allocation7 + $0xb0] sm:$0xf]
        %v1136 = vld [vmem:[#allocation7 + $0xb4] sm:$0xf]
        %v1137 = vld [vmem:[#allocation7 + $0xb8] sm:$0xf]
        %v1138 = vld [vmem:[#allocation7 + $0xbc] sm:$0xf]
        %v1139 = vld [vmem:[#allocation7 + $0xc0] sm:$0xf]
        %v1140 = vld [vmem:[#allocation7 + $0xc4] sm:$0xf]
        %v1141 = vld [vmem:[#allocation7 + $0xc8] sm:$0xf]
        %v1142 = vld [vmem:[#allocation7 + $0xcc] sm:$0xf]
        %v1143 = vld [vmem:[#allocation7 + $0xd0] sm:$0xf]
        %v1144 = vld [vmem:[#allocation7 + $0xd4] sm:$0xf]
        %v1145 = vld [vmem:[#allocation7 + $0xd8] sm:$0xf]
        %v1146 = vld [vmem:[#allocation7 + $0xdc] sm:$0xf]
        %v1147 = vld [vmem:[#allocation7 + $0xe0] sm:$0xf]
        %v1148 = vld [vmem:[#allocation7 + $0xe4] sm:$0xf]
        %v1149 = vld [vmem:[#allocation7 + $0xe8] sm:$0xf]
        %v1150 = vld [vmem:[#allocation7 + $0xec] sm:$0xf]
        %v1151 = vld [vmem:[#allocation7 + $0xf0] sm:$0xf]
        %v1152 = vld [vmem:[#allocation7 + $0xf4] sm:$0xf]
        %v1153 = vld [vmem:[#allocation7 + $0xf8] sm:$0xf]
        %v1154 = vld [vmem:[#allocation7 + $0xfc] sm:$0xf]
        %v1155 = vld [vmem:[%s4] sm:$0x1]
        %v1157 = vlaneseq
        %v1158 = vshrl.u32 %v1157, 7
        %v1159 = vsub.s32 0, %v1158
        %v1160 = vrot.slane %v1155, %v1159
        %v1226 = vunpack.c.l.b16 %v1091
        %v1227 = vunpack.c.l.b16 %v1092
        %v1228 = vunpack.c.l.b16 %v1093
        %v1229 = vunpack.c.l.b16 %v1094
        %v1230 = vunpack.c.l.b16 %v1095
        %v1231 = vunpack.c.l.b16 %v1096
        %v1232 = vunpack.c.l.b16 %v1097
        %v1233 = vunpack.c.l.b16 %v1098
        %v1234 = vunpack.c.l.b16 %v1099
        %v1235 = vunpack.c.l.b16 %v1100
        %v1236 = vunpack.c.l.b16 %v1101
        %v1237 = vunpack.c.l.b16 %v1102
        %v1238 = vunpack.c.l.b16 %v1103
        %v1239 = vunpack.c.l.b16 %v1104
        %v1240 = vunpack.c.l.b16 %v1105
        %v1241 = vunpack.c.l.b16 %v1106
        %v1242 = vunpack.c.l.b16 %v1107
        %v1243 = vunpack.c.l.b16 %v1108
        %v1244 = vunpack.c.l.b16 %v1109
        %v1245 = vunpack.c.l.b16 %v1110
        %v1246 = vunpack.c.l.b16 %v1111
        %v1247 = vunpack.c.l.b16 %v1112
        %v1248 = vunpack.c.l.b16 %v1113
        %v1249 = vunpack.c.l.b16 %v1114
        %v1250 = vunpack.c.l.b16 %v1115
        %v1251 = vunpack.c.l.b16 %v1116
        %v1252 = vunpack.c.l.b16 %v1117
        %v1253 = vunpack.c.l.b16 %v1118
        %v1254 = vunpack.c.l.b16 %v1119
        %v1255 = vunpack.c.l.b16 %v1120
        %v1256 = vunpack.c.l.b16 %v1121
        %v1257 = vunpack.c.l.b16 %v1122
        %v1258 = vunpack.c.l.b16 %v1123
        %v1259 = vunpack.c.l.b16 %v1124
        %v1260 = vunpack.c.l.b16 %v1125
        %v1261 = vunpack.c.l.b16 %v1126
        %v1262 = vunpack.c.l.b16 %v1127
        %v1263 = vunpack.c.l.b16 %v1128
        %v1264 = vunpack.c.l.b16 %v1129
        %v1265 = vunpack.c.l.b16 %v1130
        %v1266 = vunpack.c.l.b16 %v1131
        %v1267 = vunpack.c.l.b16 %v1132
        %v1268 = vunpack.c.l.b16 %v1133
        %v1269 = vunpack.c.l.b16 %v1134
        %v1270 = vunpack.c.l.b16 %v1135
        %v1271 = vunpack.c.l.b16 %v1136
        %v1272 = vunpack.c.l.b16 %v1137
        %v1273 = vunpack.c.l.b16 %v1138
        %v1274 = vunpack.c.l.b16 %v1139
        %v1275 = vunpack.c.l.b16 %v1140
        %v1276 = vunpack.c.l.b16 %v1141
        %v1277 = vunpack.c.l.b16 %v1142
        %v1278 = vunpack.c.l.b16 %v1143
        %v1279 = vunpack.c.l.b16 %v1144
        %v1280 = vunpack.c.l.b16 %v1145
        %v1281 = vunpack.c.l.b16 %v1146
        %v1282 = vunpack.c.l.b16 %v1147
        %v1283 = vunpack.c.l.b16 %v1148
        %v1284 = vunpack.c.l.b16 %v1149
        %v1285 = vunpack.c.l.b16 %v1150
        %v1286 = vunpack.c.l.b16 %v1151
        %v1287 = vunpack.c.l.b16 %v1152
        %v1288 = vunpack.c.l.b16 %v1153
        %v1289 = vunpack.c.l.b16 %v1154
        %v1290 = vpack.c.b16 %v1227, %v1226
        %v1291 = vpack.c.b16 %v1229, %v1228
        %v1292 = vpack.c.b16 %v1231, %v1230
        %v1293 = vpack.c.b16 %v1233, %v1232
        %v1294 = vpack.c.b16 %v1235, %v1234
        %v1295 = vpack.c.b16 %v1237, %v1236
        %v1296 = vpack.c.b16 %v1239, %v1238
        %v1297 = vpack.c.b16 %v1241, %v1240
        %v1298 = vpack.c.b16 %v1243, %v1242
        %v1299 = vpack.c.b16 %v1245, %v1244
        %v1300 = vpack.c.b16 %v1247, %v1246
        %v1301 = vpack.c.b16 %v1249, %v1248
        %v1302 = vpack.c.b16 %v1251, %v1250
        %v1303 = vpack.c.b16 %v1253, %v1252
        %v1304 = vpack.c.b16 %v1255, %v1254
        %v1305 = vpack.c.b16 %v1257, %v1256
        %v1306 = vpack.c.b16 %v1259, %v1258
        %v1307 = vpack.c.b16 %v1261, %v1260
        %v1308 = vpack.c.b16 %v1263, %v1262
        %v1309 = vpack.c.b16 %v1265, %v1264
        %v1310 = vpack.c.b16 %v1267, %v1266
        %v1311 = vpack.c.b16 %v1269, %v1268
        %v1312 = vpack.c.b16 %v1271, %v1270
        %v1313 = vpack.c.b16 %v1273, %v1272
        %v1314 = vpack.c.b16 %v1275, %v1274
        %v1315 = vpack.c.b16 %v1277, %v1276
        %v1316 = vpack.c.b16 %v1279, %v1278
        %v1317 = vpack.c.b16 %v1281, %v1280
        %v1318 = vpack.c.b16 %v1283, %v1282
        %v1319 = vpack.c.b16 %v1285, %v1284
        %v1320 = vpack.c.b16 %v1287, %v1286
        %v1321 = vpack.c.b16 %v1289, %v1288
        %1354 = vmatprep.subr.bf16.mxu0 0
        %1355 = vmatpush1.bf16.msra.mxu0 %v1290
        %1356 = vmatprep.subr.bf16.mxu0 0
        %1357 = vmatpush1.bf16.msra.mxu0 %v1291
        %1358 = vmatprep.subr.bf16.mxu0 0
        %1359 = vmatpush1.bf16.msra.mxu0 %v1292
        %1360 = vmatprep.subr.bf16.mxu0 0
        %1361 = vmatpush1.bf16.msra.mxu0 %v1293
        %1362 = vmatprep.subr.bf16.mxu0 0
        %1363 = vmatpush1.bf16.msra.mxu0 %v1294
        %1364 = vmatprep.subr.bf16.mxu0 0
        %1365 = vmatpush1.bf16.msra.mxu0 %v1295
        %1366 = vmatprep.subr.bf16.mxu0 0
        %1367 = vmatpush1.bf16.msra.mxu0 %v1296
        %1368 = vmatprep.subr.bf16.mxu0 0
        %1369 = vmatpush1.bf16.msra.mxu0 %v1297
        %1370 = vmatprep.subr.bf16.mxu0 0
        %1371 = vmatpush1.bf16.msra.mxu0 %v1298
        %1372 = vmatprep.subr.bf16.mxu0 0
        %1373 = vmatpush1.bf16.msra.mxu0 %v1299
        %1374 = vmatprep.subr.bf16.mxu0 0
        %1375 = vmatpush1.bf16.msra.mxu0 %v1300
        %1376 = vmatprep.subr.bf16.mxu0 0
        %1377 = vmatpush1.bf16.msra.mxu0 %v1301
        %1378 = vmatprep.subr.bf16.mxu0 0
        %1379 = vmatpush1.bf16.msra.mxu0 %v1302
        %1380 = vmatprep.subr.bf16.mxu0 0
        %1381 = vmatpush1.bf16.msra.mxu0 %v1303
        %1382 = vmatprep.subr.bf16.mxu0 0
        %1383 = vmatpush1.bf16.msra.mxu0 %v1304
        %1384 = vmatprep.subr.bf16.mxu0 0
        %1385 = vmatpush1.bf16.msra.mxu0 %v1305
        %1386 = vmatprep.mubr.bf16.mxu0 %v1060
        %1387 = vmatmul.mubr.bf16.gmra.mrb[0].mxu0 %v1059
        %v1388 = vpop.f32.mrb[0].mxu0
        %v1389 = vadd.f32 %v1160, %v1388
        %v1390 = vpop.f32.mrb[0].mxu0
        %v1391 = vpop.f32.mrb[0].mxu0
        %v1392 = vadd.f32 %v1160, %v1391
        %v1393 = vpop.f32.mrb[0].mxu0
        %1394 = vmatprep.mubr.bf16.mxu0 %v1064
        %1395 = vmatmul.mubr.bf16.gmra.mrb[0].mxu0 %v1063
        %v1396 = vpop.f32.mrb[0].mxu0
        %v1397 = vadd.f32 %v1160, %v1396
        %v1398 = vpop.f32.mrb[0].mxu0
        %v1399 = vpop.f32.mrb[0].mxu0
        %v1400 = vadd.f32 %v1160, %v1399
        %v1401 = vpop.f32.mrb[0].mxu0
        %1402 = vmatprep.mubr.bf16.mxu0 %v1068
        %1403 = vmatmul.mubr.bf16.gmra.mrb[0].mxu0 %v1067
        %v1404 = vpop.f32.mrb[0].mxu0
        %v1405 = vadd.f32 %v1160, %v1404
        %v1406 = vpop.f32.mrb[0].mxu0
        %v1407 = vpop.f32.mrb[0].mxu0
        %v1408 = vadd.f32 %v1160, %v1407
        %v1409 = vpop.f32.mrb[0].mxu0
        %1410 = vmatprep.mubr.bf16.mxu0 %v1072
        %1411 = vmatmul.mubr.bf16.gmra.mrb[0].mxu0 %v1071
        %v1412 = vpop.f32.mrb[0].mxu0
        %v1413 = vadd.f32 %v1160, %v1412
        %v1414 = vpop.f32.mrb[0].mxu0
        %v1415 = vpop.f32.mrb[0].mxu0
        %v1416 = vadd.f32 %v1160, %v1415
        %v1417 = vpop.f32.mrb[0].mxu0
        %1418 = vmatprep.mubr.bf16.mxu0 %v1076
        %1419 = vmatmul.mubr.bf16.gmra.mrb[0].mxu0 %v1075
        %v1420 = vpop.f32.mrb[0].mxu0
        %v1421 = vadd.f32 %v1160, %v1420
        %v1422 = vpop.f32.mrb[0].mxu0
        %v1423 = vpop.f32.mrb[0].mxu0
        %v1424 = vadd.f32 %v1160, %v1423
        %v1425 = vpop.f32.mrb[0].mxu0
        %1426 = vmatprep.mubr.bf16.mxu0 %v1080
        %1427 = vmatmul.mubr.bf16.gmra.mrb[0].mxu0 %v1079
        %v1428 = vpop.f32.mrb[0].mxu0
        %v1429 = vadd.f32 %v1160, %v1428
        %v1430 = vpop.f32.mrb[0].mxu0
        %v1431 = vpop.f32.mrb[0].mxu0
        %v1432 = vadd.f32 %v1160, %v1431
        %v1433 = vpop.f32.mrb[0].mxu0
        %1434 = vmatprep.mubr.bf16.mxu0 %v1084
        %1435 = vmatmul.mubr.bf16.gmra.mrb[0].mxu0 %v1083
        %v1436 = vpop.f32.mrb[0].mxu0
        %v1437 = vadd.f32 %v1160, %v1436
        %v1438 = vpop.f32.mrb[0].mxu0
        %v1439 = vpop.f32.mrb[0].mxu0
        %v1440 = vadd.f32 %v1160, %v1439
        %v1441 = vpop.f32.mrb[0].mxu0
        %1442 = vmatprep.mubr.bf16.mxu0 %v1088
        %1443 = vmatmul.mubr.bf16.gmra.mrb[0].mxu0 %v1087
        %v1444 = vpop.f32.mrb[0].mxu0
        %v1445 = vadd.f32 %v1160, %v1444
        %v1446 = vpop.f32.mrb[0].mxu0
        %v1447 = vpop.f32.mrb[0].mxu0
        %v1448 = vadd.f32 %v1160, %v1447
        %v1449 = vpop.f32.mrb[0].mxu0
        %1450 = vdwg.mxu0
        %1451 = vmatprep.subr.bf16.mxu0 0
        %1452 = vmatpush1.bf16.msra.mxu0 %v1306
        %1453 = vmatprep.subr.bf16.mxu0 0
        %1454 = vmatpush1.bf16.msra.mxu0 %v1307
        %1455 = vmatprep.subr.bf16.mxu0 0
        %1456 = vmatpush1.bf16.msra.mxu0 %v1308
        %1457 = vmatprep.subr.bf16.mxu0 0
        %1458 = vmatpush1.bf16.msra.mxu0 %v1309
        %1459 = vmatprep.subr.bf16.mxu0 0
        %1460 = vmatpush1.bf16.msra.mxu0 %v1310
        %1461 = vmatprep.subr.bf16.mxu0 0
        %1462 = vmatpush1.bf16.msra.mxu0 %v1311
        %1463 = vmatprep.subr.bf16.mxu0 0
        %1464 = vmatpush1.bf16.msra.mxu0 %v1312
        %1465 = vmatprep.subr.bf16.mxu0 0
        %1466 = vmatpush1.bf16.msra.mxu0 %v1313
        %1467 = vmatprep.subr.bf16.mxu0 0
        %1468 = vmatpush1.bf16.msra.mxu0 %v1314
        %1469 = vmatprep.subr.bf16.mxu0 0
        %1470 = vmatpush1.bf16.msra.mxu0 %v1315
        %1471 = vmatprep.subr.bf16.mxu0 0
        %1472 = vmatpush1.bf16.msra.mxu0 %v1316
        %1473 = vmatprep.subr.bf16.mxu0 0
        %1474 = vmatpush1.bf16.msra.mxu0 %v1317
        %1475 = vmatprep.subr.bf16.mxu0 0
        %1476 = vmatpush1.bf16.msra.mxu0 %v1318
        %1477 = vmatprep.subr.bf16.mxu0 0
        %1478 = vmatpush1.bf16.msra.mxu0 %v1319
        %1479 = vmatprep.subr.bf16.mxu0 0
        %1480 = vmatpush1.bf16.msra.mxu0 %v1320
        %1481 = vmatprep.subr.bf16.mxu0 0
        %1482 = vmatpush1.bf16.msra.mxu0 %v1321
        %1483 = vmatprep.mubr.bf16.mxu0 %v1062
        %1484 = vmatmul.mubr.bf16.gmra.mrb[0].mxu0 %v1061
        %v1485 = vpop.f32.mrb[0].mxu0
        %v1486 = vadd.f32 %v1389, %v1485
        %v1487 = vpop.f32.mrb[0].mxu0
        %v1488 = vpop.f32.mrb[0].mxu0
        %v1489 = vadd.f32 %v1392, %v1488
        %v1490 = vpop.f32.mrb[0].mxu0
        %1491 = vmatprep.mubr.bf16.mxu0 %v1066
        %1492 = vmatmul.mubr.bf16.gmra.mrb[0].mxu0 %v1065
        %v1493 = vpop.f32.mrb[0].mxu0
        %v1494 = vadd.f32 %v1397, %v1493
        %v1495 = vpop.f32.mrb[0].mxu0
        %v1496 = vpop.f32.mrb[0].mxu0
        %v1497 = vadd.f32 %v1400, %v1496
        %v1498 = vpop.f32.mrb[0].mxu0
        %1499 = vmatprep.mubr.bf16.mxu0 %v1070
        %1500 = vmatmul.mubr.bf16.gmra.mrb[0].mxu0 %v1069
        %v1501 = vpop.f32.mrb[0].mxu0
        %v1502 = vadd.f32 %v1405, %v1501
        %v1503 = vpop.f32.mrb[0].mxu0
        %v1504 = vpop.f32.mrb[0].mxu0
        %v1505 = vadd.f32 %v1408, %v1504
        %v1506 = vpop.f32.mrb[0].mxu0
        %1507 = vmatprep.mubr.bf16.mxu0 %v1074
        %1508 = vmatmul.mubr.bf16.gmra.mrb[0].mxu0 %v1073
        %v1509 = vpop.f32.mrb[0].mxu0
        %v1510 = vadd.f32 %v1413, %v1509
        %v1511 = vpop.f32.mrb[0].mxu0
        %v1512 = vpop.f32.mrb[0].mxu0
        %v1513 = vadd.f32 %v1416, %v1512
        %v1514 = vpop.f32.mrb[0].mxu0
        %1515 = vmatprep.mubr.bf16.mxu0 %v1078
        %1516 = vmatmul.mubr.bf16.gmra.mrb[0].mxu0 %v1077
        %v1517 = vpop.f32.mrb[0].mxu0
        %v1518 = vadd.f32 %v1421, %v1517
        %v1519 = vpop.f32.mrb[0].mxu0
        %v1520 = vpop.f32.mrb[0].mxu0
        %v1521 = vadd.f32 %v1424, %v1520
        %v1522 = vpop.f32.mrb[0].mxu0
        %1523 = vmatprep.mubr.bf16.mxu0 %v1082
        %1524 = vmatmul.mubr.bf16.gmra.mrb[0].mxu0 %v1081
        %v1525 = vpop.f32.mrb[0].mxu0
        %v1526 = vadd.f32 %v1429, %v1525
        %v1527 = vpop.f32.mrb[0].mxu0
        %v1528 = vpop.f32.mrb[0].mxu0
        %v1529 = vadd.f32 %v1432, %v1528
        %v1530 = vpop.f32.mrb[0].mxu0
        %1531 = vmatprep.mubr.bf16.mxu0 %v1086
        %1532 = vmatmul.mubr.bf16.gmra.mrb[0].mxu0 %v1085
        %v1533 = vpop.f32.mrb[0].mxu0
        %v1534 = vadd.f32 %v1437, %v1533
        %v1535 = vpop.f32.mrb[0].mxu0
        %v1536 = vpop.f32.mrb[0].mxu0
        %v1537 = vadd.f32 %v1440, %v1536
        %v1538 = vpop.f32.mrb[0].mxu0
        %1539 = vmatprep.mubr.bf16.mxu0 %v1090
        %1540 = vmatmul.mubr.bf16.gmra.mrb[0].mxu0 %v1089
        %v1541 = vpop.f32.mrb[0].mxu0
        %v1542 = vadd.f32 %v1445, %v1541
        %v1543 = vpop.f32.mrb[0].mxu0
        %v1544 = vpop.f32.mrb[0].mxu0
        %v1545 = vadd.f32 %v1448, %v1544
        %v1546 = vpop.f32.mrb[0].mxu0
        %1547 = vdwg.mxu0
        %1548 = vst [vmem:[%s271] sm:$0xff] %v1486
        %1549 = vst [vmem:[%s271 + $0x8] sm:$0xff] %v1489
        %1550 = vst [vmem:[%s271 + $0x10] sm:$0xff] %v1494
        %1551 = vst [vmem:[%s271 + $0x18] sm:$0xff] %v1497
        %1552 = vst [vmem:[%s271 + $0x20] sm:$0xff] %v1502
        %1553 = vst [vmem:[%s271 + $0x28] sm:$0xff] %v1505
        %1554 = vst [vmem:[%s271 + $0x30] sm:$0xff] %v1510
        %1555 = vst [vmem:[%s271 + $0x38] sm:$0xff] %v1513
        %1556 = vst [vmem:[%s271 + $0x40] sm:$0xff] %v1518
        %1557 = vst [vmem:[%s271 + $0x48] sm:$0xff] %v1521
        %1558 = vst [vmem:[%s271 + $0x50] sm:$0xff] %v1526
        %1559 = vst [vmem:[%s271 + $0x58] sm:$0xff] %v1529
        %1560 = vst [vmem:[%s271 + $0x60] sm:$0xff] %v1534
        %1561 = vst [vmem:[%s271 + $0x68] sm:$0xff] %v1537
        %1562 = vst [vmem:[%s271 + $0x70] sm:$0xff] %v1542
        %1563 = vst [vmem:[%s271 + $0x78] sm:$0xff] %v1545
        %s1564 = sand.u32 %s141, 1
        %s1565 = scalar_lea.sflag [#allocation4], %s1564
        %s1566 = sand.u32 %s141, 1
        %s1567 = smul.addr %s1566, 128
        %s1568 = scalar_lea.vmem [#allocation8], %s1567
        // Predicated region
        $region53: #{mlp_pallas.1} parent=39 // pred_check
          %p1569 = pneg %p151
        $region54: #{mlp_pallas.1} parent=39 // pred_check_branch
          %1571 = sbr.rel (%p1569) target = $region56
        $region55: #{mlp_pallas.1} parent=39 // pred_region
          %s1572 = smul.u32 16, %s23
          %s1574 = ssub.s32 2048, 2048
          %1575 = vsyncadd %s1565, %s1574
          %s1576 = smul.addr %s1572, 128
          %s1577 = scalar_lea.hbm %s5, %s1576
          %s1578 = sshll.u32 %s1568, 4
          %s1579 = int_to_ptr.vmem [resolvable:$true] %s1578
          %1584 = dma.vmem_to_hbm [thread:$0]  %s1579, 2048, %s1577, %s1565, 128, 128, 8
        $region56: #{mlp_pallas.1} parent=39 // pred_fallthru
          _
      $region40: #{mlp_pallas.1} parent=5 // pred_fallthru
        _
      %p1585 = scmp.le.s32.totalorder 2, %s18
      // Predicated region
      $region57: #{mlp_pallas.1} parent=5 // pred_check
        %p1586 = pneg %p1585
      $region58: #{mlp_pallas.1} parent=5 // pred_check_branch
        %1588 = sbr.rel (%p1586) target = $region60
      $region59: #{mlp_pallas.1} parent=5 // pred_region
        %s1589 = ssub.s32 %s18, 2
        // Predicated region
        $region61: #{mlp_pallas.1} parent=59 // pred_check
          %p1590 = pneg %p157
        $region62: #{mlp_pallas.1} parent=59 // pred_check_branch
          %1592 = sbr.rel (%p1590) target = $region64
        $region63: #{mlp_pallas.1} parent=59 // pred_region
          %s1593 = sand.u32 %s142, 1
          %s1594 = scalar_lea.sflag [#allocation4], %s1593
          %s1595 = sand.u32 %s142, 1
          %s1596 = smul.addr %s1595, 128
          %s1597 = scalar_lea.vmem [#allocation8], %s1596
          %1598 = dma.done %s1594, 2048
        $region64: #{mlp_pallas.1} parent=59 // pred_fallthru
          _
      $region60: #{mlp_pallas.1} parent=5 // pred_fallthru
        _
    $region6: #{mlp_pallas.1} parent=1 // loop_footer
      %s22 = sadd.s32 1, %s18
    $region7: #{mlp_pallas.1} parent=1 // loop_footer_branch
      %17 = sbr.rel target = $region3
    $region8: #{mlp_pallas.1} parent=1 // loop_exit
      _
    %1599 = vsyncpa [#allocation3], 1
    %s1600 = scalar_lea.sflag [#allocation3], 1
    %1601 = vsyncpa %s1600, 1
    %1602 = vsyncpa [#allocation6], 1
    %1603 = vsyncpa [#allocation4], 1
    %s1604 = scalar_lea.sflag [#allocation4], 1
    %1605 = vsyncpa %s1604, 1

</llo_original>
